<compile_context>
chip_gen: v7x
topology: tpu7x:2x2x1
jax: 0.10.0
libtpu: 0.0.40
codegen_flags: <defaults>
</compile_context>

<pallas_src>
import jax
import jax.numpy as jnp
from jax import lax
from jax.experimental import pallas as pl
from jax.experimental.pallas import tpu as pltpu

# ---------------- configuration (matches GluNet defaults) ----------------
N_STEPS_PAST = 16
NUM_INPUTS = 4
DILATIONS = (1, 1, 2, 4, 8)
CAUSAL_CH1 = 32
CAUSAL_CH2 = 64
SKIP_CH = 32
POST_CH = 16
RECEPTIVE_FIELD = sum(DILATIONS) + 1  # 17
BATCH = 2

LANES = 128


def _round_up(n, m):
    return ((n + m - 1) // m) * m


# Rows reserved per batch element. Data is right-aligned inside its block; the
# (RES_ROWS - N_STEPS_PAST) leading rows stay zero and double as both the
# causal zero-history and the receptive-field left padding.
RES_ROWS = _round_up(max(N_STEPS_PAST + 1, RECEPTIVE_FIELD), 8)  # 24


# ---------------- weight / bias slab layout (static row offsets) ------------
def _build_layouts():
    w_entries = [
        ("c1", 2 * NUM_INPUTS, CAUSAL_CH1),
        ("c2", 2 * CAUSAL_CH1, CAUSAL_CH1),
        ("c3", 2 * CAUSAL_CH1, CAUSAL_CH2),
        ("c4", 2 * CAUSAL_CH2, CAUSAL_CH2),
    ]
    for i in range(len(DILATIONS)):
        w_entries.append((f"dil{i}", 2 * CAUSAL_CH2, CAUSAL_CH2))
    for i in range(len(DILATIONS)):
        w_entries.append((f"rs{i}", CAUSAL_CH2, CAUSAL_CH2 + SKIP_CH))
    w_entries += [("p1", SKIP_CH, POST_CH), ("p2", POST_CH, 1)]

    w_offs, off = {}, 0
    for name, k, n in w_entries:
        w_offs[name] = (off, k, n)
        off += _round_up(k, 16)          # keep offsets aligned to bf16 (16,128) tiles
    w_rows = _round_up(off, 16)

    b_entries = [("c1", CAUSAL_CH1), ("c2", CAUSAL_CH1),
                 ("c3", CAUSAL_CH2), ("c4", CAUSAL_CH2)]
    for i in range(len(DILATIONS)):
        b_entries.append((f"dil{i}", CAUSAL_CH2))
    for i in range(len(DILATIONS)):
        b_entries.append((f"rs{i}", CAUSAL_CH2 + SKIP_CH))
    b_entries += [("p1", POST_CH), ("p2", 1)]
    b_offs = {name: (row, n) for row, (name, n) in enumerate(b_entries)}
    b_rows = _round_up(len(b_entries), 8)
    return w_offs, w_rows, b_offs, b_rows


W_OFFS, W_ROWS, B_OFFS, B_ROWS = _build_layouts()


# --------------------------- Pallas kernel --------------------------------
def glunet_kernel(x_ref, w_ref, b_ref, out_ref):
    f32, bf16 = jnp.float32, jnp.bfloat16
    P = RES_ROWS
    L = N_STEPS_PAST

    def _w(name):
        off, k, n = W_OFFS[name]
        return w_ref[off:off + k, :n]          # (k, n) bf16, static slice

    def _b(name):
        row, n = B_OFFS[name]
        return b_ref[row:row + 1, :n]          # (1, n) f32, static slice

    x = x_ref[...]                             # (batch*P, NUM_INPUTS) f32
    rows = x.shape[0]
    num_blocks = rows // P

    # Rows holding real time steps (the last L rows of every P-row block).
    row_idx = lax.broadcasted_iota(jnp.int32, (rows, 1), 0)
    data_row = row_idx < 0                     # all-False (batch*P, 1) bool
    for bb in range(num_blocks):
        lo = bb * P + (P - L)
        hi = (bb + 1) * P
        data_row = jnp.logical_or(
            data_row, jnp.logical_and(row_idx >= lo, row_idx < hi))

    def causal_layer(h, name, relu):
        # Conv1d(kernel=2, padding=1) + Chomp1d(1):
        #   out[t] = W_tap0 @ h[t-1] + W_tap1 @ h[t] + bias,  with h[-1] == 0.
        # Both taps fused into one MXU matmul via lane-concat of [h[t-1] | h[t]]
        # against the row-stacked (2*Cin, Cout) weight.
        hb = h.astype(bf16)
        prev = jnp.concatenate(
            [jnp.zeros((1, hb.shape[1]), bf16), hb[:-1]], axis=0)
        taps = jnp.concatenate([prev, hb], axis=-1)        # (rows, 2*Cin)
        out = jnp.dot(taps, _w(name), preferred_element_type=f32) + _b(name)
        if relu:
            out = jnp.maximum(out, 0.0)
        # Keep padding/alignment rows exactly zero: they supply the zero
        # history for the first real time step of every batch element and the
        # receptive-field left padding for the dilation stack.
        return jnp.where(data_row, out, 0.0)

    h = causal_layer(x, "c1", True)
    h = causal_layer(h, "c2", True)
    h = causal_layer(h, "c3", True)
    res = causal_layer(h, "c4", False)                     # (rows, 64)

    # Residual stack on a fixed-shape buffer: the valid residual of every layer
    # is always right-aligned, so dilated-conv outputs, residual adds and skip
    # contributions all land at the same buffer rows (garbage rows up front are
    # finite and never read by valid rows).
    skip_acc = jnp.zeros((rows, SKIP_CH), f32)
    for i, d in enumerate(DILATIONS):
        rb = res.astype(bf16)
        shifted = jnp.concatenate(
            [jnp.zeros((d, CAUSAL_CH2), bf16), rb[:-d]], axis=0)  # rb[p - d]
        taps = jnp.concatenate([shifted, rb], axis=-1)            # (rows, 128)
        pre = (jnp.dot(taps, _w(f"dil{i}"), preferred_element_type=f32)
               + _b(f"dil{i}"))
        gated = jnp.tanh(pre) * jax.nn.sigmoid(pre)
        # residual(64 cols) + skip(32 cols) 1x1 convs fused into one matmul
        rs = (jnp.dot(gated.astype(bf16), _w(f"rs{i}"),
                      preferred_element_type=f32) + _b(f"rs{i}"))
        res = res + rs[:, :CAUSAL_CH2]
        skip_acc = skip_acc + rs[:, CAUSAL_CH2:]

    # PostProcess: relu -> 1x1 conv -> relu -> 1x1 conv.  1x1 convs are
    # pointwise in time, so run them on the whole buffer; the wrapper extracts
    # the last time step (buffer row P-1) of every batch element.
    s = jnp.maximum(skip_acc, 0.0)
    s = jnp.maximum(
        jnp.dot(s.astype(bf16), _w("p1"), preferred_element_type=f32) + _b("p1"),
        0.0)
    s = jnp.dot(s.astype(bf16), _w("p2"), preferred_element_type=f32) + _b("p2")
    out_ref[...] = s                                              # (rows, 1)


def _cost_estimate(batch):
    rows = batch * RES_ROWS
    macs = rows * sum(k * n for (_, k, n) in W_OFFS.values())
    flops = 2 * macs + 10 * rows * CAUSAL_CH2 * len(DILATIONS)
    transcendentals = 2 * rows * CAUSAL_CH2 * len(DILATIONS)   # tanh + sigmoid
    bytes_accessed = (W_ROWS * LANES * 2 + B_ROWS * LANES * 4
                      + rows * NUM_INPUTS * 4 + rows * 4)
    return pl.CostEstimate(flops=int(flops),
                           transcendentals=int(transcendentals),
                           bytes_accessed=int(bytes_accessed))


@jax.jit
def glunet_pallas(x_ncl, params):
    B, C, L = x_ncl.shape
    assert C == NUM_INPUTS and L == N_STEPS_PAST
    P = RES_ROWS
    w_slab, b_slab = pack_kernel_weights(params)

    # NCL -> time-major rows, right-aligned inside P-row blocks (leading rows 0).
    x_blc = jnp.transpose(x_ncl, (0, 2, 1)).astype(jnp.float32)   # (B, L, C)
    x_pad = jnp.pad(x_blc, ((0, 0), (P - L, 0), (0, 0)))          # (B, P, C)
    x2d = x_pad.reshape(B * P, C)

    out_full = pl.pallas_call(
        glunet_kernel,
        out_shape=jax.ShapeDtypeStruct((B * P, 1), jnp.float32),
        grid=(1,),   # single fat step: whole problem fits easily in VMEM
        in_specs=[
            pl.BlockSpec((B * P, C), lambda i: (0, 0)),
            pl.BlockSpec((W_ROWS, LANES), lambda i: (0, 0)),
            pl.BlockSpec((B_ROWS, LANES), lambda i: (0, 0)),
        ],
        out_specs=pl.BlockSpec((B * P, 1), lambda i: (0, 0)),
        compiler_params=pltpu.CompilerParams(
            dimension_semantics=("arbitrary",)),
        cost_estimate=_cost_estimate(B),
    )(x2d, w_slab, b_slab)

    # Last time step of every batch element (PostProcess takes [:, :, -1]).
    return out_full.reshape(B, P)[:, P - 1:]                      # (B, 1)


# ----------------------- parameter construction ---------------------------
def init_params(seed=0):
    key = jax.random.PRNGKey(seed)

    def conv_init(k, cout, cin, ksz):
        kw, kb = jax.random.split(k)
        bound = 1.0 / float(cin * ksz) ** 0.5
        w = jax.random.uniform(kw, (cout, cin, ksz), jnp.float32, -bound, bound)
        b = jax.random.uniform(kb, (cout,), jnp.float32, -bound, bound)
        return w, b

    keys = iter(jax.random.split(key, 32))
    params = {
        "causal": [
            conv_init(next(keys), CAUSAL_CH1, NUM_INPUTS, 2),
            conv_init(next(keys), CAUSAL_CH1, CAUSAL_CH1, 2),
            conv_init(next(keys), CAUSAL_CH2, CAUSAL_CH1, 2),
            conv_init(next(keys), CAUSAL_CH2, CAUSAL_CH2, 2),
        ],
        "res": [],
        "post": [],
    }
    for _ in DILATIONS:
        dilated = conv_init(next(keys), CAUSAL_CH2, CAUSAL_CH2, 2)
        conv1 = conv_init(next(keys), CAUSAL_CH2, CAUSAL_CH2, 1)
        conv2 = conv_init(next(keys), SKIP_CH, CAUSAL_CH2, 1)
        params["res"].append((dilated, conv1, conv2))
    params["post"] = [
        conv_init(next(keys), POST_CH, SKIP_CH, 1),
        conv_init(next(keys), 1, POST_CH, 1),
    ]
    return params


def pack_kernel_weights(p):
    """Pack all conv weights into one bf16 (W_ROWS, 128) slab (conv taps stacked
    along rows, residual/skip 1x1 convs stacked along columns) and all biases
    into one f32 (B_ROWS, 128) slab."""
    def tap(wt, t):  # (Cout, Cin, K) -> (Cin, Cout) for tap t
        return jnp.transpose(wt[:, :, t])

    w_slab = jnp.zeros((W_ROWS, LANES), jnp.float32)
    b_slab = jnp.zeros((B_ROWS, LANES), jnp.float32)

    def put_w(slab, name, mat):
        off, k, n = W_OFFS[name]
        assert mat.shape == (k, n), (name, mat.shape, (k, n))
        return slab.at[off:off + k, :n].set(mat)

    def put_b(slab, name, vec):
        row, n = B_OFFS[name]
        assert vec.shape == (n,), (name, vec.shape, n)
        return slab.at[row, :n].set(vec)

    for name, (wt, bias) in zip(("c1", "c2", "c3", "c4"), p["causal"]):
        w_slab = put_w(w_slab, name,
                       jnp.concatenate([tap(wt, 0), tap(wt, 1)], axis=0))
        b_slab = put_b(b_slab, name, bias)

    for i, ((dw, dbv), (r1w, r1b), (r2w, r2b)) in enumerate(p["res"]):
        w_slab = put_w(w_slab, f"dil{i}",
                       jnp.concatenate([tap(dw, 0), tap(dw, 1)], axis=0))
        b_slab = put_b(b_slab, f"dil{i}", dbv)
        w_slab = put_w(w_slab, f"rs{i}",
                       jnp.concatenate([tap(r1w, 0), tap(r2w, 0)], axis=1))
        b_slab = put_b(b_slab, f"rs{i}", jnp.concatenate([r1b, r2b], axis=0))

    (pw1, pb1), (pw2, pb2) = p["post"]
    w_slab = put_w(w_slab, "p1", tap(pw1, 0))
    b_slab = put_b(b_slab, "p1", pb1)
    w_slab = put_w(w_slab, "p2", tap(pw2, 0))
    b_slab = put_b(b_slab, "p2", pb2)
    return w_slab.astype(jnp.bfloat16), b_slab


# --------------------- pure-JAX reference (PyTorch semantics) -------------
def conv1d_ref(x, w, b, padding=0, dilation=1):
    out = lax.conv_general_dilated(
        x, w, window_strides=(1,), padding=[(padding, padding)],
        rhs_dilation=(dilation,), dimension_numbers=("NCH", "OIH", "NCH"))
    return out + b[None, :, None]


def glunet_ref(x, p):
    h = x
    for i, (w, b) in enumerate(p["causal"]):
        h = conv1d_ref(h, w, b, padding=1)
        if i < 3:
            h = jax.nn.relu(h)
        h = h[:, :, :-1]  # Chomp1d(1)

    pad = max(RECEPTIVE_FIELD - h.shape[2], 0)
    h = jnp.pad(h, ((0, 0), (0, 0), (pad, 0)))

    skips = []
    for i, d in enumerate(DILATIONS):
        (dw, dbb), (r1w_, r1b_), (r2w_, r2b_) = p["res"][i]
        pre = conv1d_ref(h, dw, dbb, padding=0, dilation=d)
        gated = jnp.tanh(pre) * jax.nn.sigmoid(pre)
        res = conv1d_ref(gated, r1w_, r1b_)
        skip = conv1d_ref(gated, r2w_, r2b_)
        h = res + h[:, :, h.shape[2] - res.shape[2]:]
        skips.append(skip)

    out_len = h.shape[2]
    s = sum(sk[:, :, sk.shape[2] - out_len:] for sk in skips)
    (pw1, pb1), (pw2, pb2) = p["post"]
    s = jax.nn.relu(s)
    s = jax.nn.relu(conv1d_ref(s, pw1, pb1))
    s = conv1d_ref(s, pw2, pb2)
    return s[:, :, -1]  # (B, 1)


# --------------------------------- main ------------------------------------
if __name__ == "__main__":
    params = init_params(seed=0)
    x = jax.random.normal(jax.random.PRNGKey(0),
                          (BATCH, NUM_INPUTS, N_STEPS_PAST), jnp.float32)

    out_pallas = jax.block_until_ready(glunet_pallas(x, params))
    out_ref = jax.block_until_ready(glunet_ref(x, params))

    assert out_pallas.shape == (BATCH, 1), out_pallas.shape
    # Kernel uses bf16 MXU operands (f32 accumulation); compare at bf16-level
    # tolerance against the full-f32 reference.
    assert jnp.allclose(out_pallas, out_ref, atol=1e-2, rtol=1e-2), (
        out_pallas, out_ref)
    print("KERNEL_OK")
</pallas_src>

<mosaic_0001>
module attributes {stable_mosaic.version = 11 : i64} {
  func.func @glunet_kernel(%arg0: i32, %arg1: memref<48x4xf32, #tpu.memory_space<vmem>>, %arg2: memref<1280x128xbf16, #tpu.memory_space<vmem>>, %arg3: memref<16x128xf32, #tpu.memory_space<vmem>>, %arg4: memref<48x1xf32, #tpu.memory_space<vmem>>) attributes {dimension_semantics = [#tpu.dimension_semantics<arbitrary>], iteration_bounds = array<i64: 1>, scalar_prefetch = 0 : i64, scratch_operands = 0 : i64, tpu.core_type = #tpu.core_type<tc>, window_params = [{pipeline_mode = #tpu.pipeline_mode<synchronous>, transform_indices = @transform_0, window_bounds = array<i64: 48, 4>}, {pipeline_mode = #tpu.pipeline_mode<synchronous>, transform_indices = @transform_1, window_bounds = array<i64: 1280, 128>}, {pipeline_mode = #tpu.pipeline_mode<synchronous>, transform_indices = @transform_2, window_bounds = array<i64: 16, 128>}, {pipeline_mode = #tpu.pipeline_mode<synchronous>, transform_indices = @transform_3, window_bounds = array<i64: 48, 1>}]} {
    %c0 = arith.constant 0 : index
    %c0_0 = arith.constant 0 : index
    %0 = vector.load %arg1[%c0, %c0_0] : memref<48x4xf32, #tpu.memory_space<vmem>>, vector<48x4xf32>
    %1 = tpu.iota {dimensions = array<i32: 0>} : vector<48x1xi32>
    %c0_i32 = arith.constant 0 : i32
    %2 = vector.broadcast %c0_i32 : i32 to vector<48x1xi32>
    %3 = arith.cmpi slt, %1, %2 : vector<48x1xi32>
    %c8_i32 = arith.constant 8 : i32
    %4 = vector.broadcast %c8_i32 : i32 to vector<48x1xi32>
    %5 = arith.cmpi sge, %1, %4 : vector<48x1xi32>
    %c24_i32 = arith.constant 24 : i32
    %6 = vector.broadcast %c24_i32 : i32 to vector<48x1xi32>
    %7 = arith.cmpi slt, %1, %6 : vector<48x1xi32>
    %8 = arith.andi %5, %7 : vector<48x1xi1>
    %9 = arith.ori %3, %8 : vector<48x1xi1>
    %c32_i32 = arith.constant 32 : i32
    %10 = vector.broadcast %c32_i32 : i32 to vector<48x1xi32>
    %11 = arith.cmpi sge, %1, %10 : vector<48x1xi32>
    %c48_i32 = arith.constant 48 : i32
    %12 = vector.broadcast %c48_i32 : i32 to vector<48x1xi32>
    %13 = arith.cmpi slt, %1, %12 : vector<48x1xi32>
    %14 = arith.andi %11, %13 : vector<48x1xi1>
    %15 = arith.ori %9, %14 : vector<48x1xi1>
    %16 = arith.truncf %0 : vector<48x4xf32> to vector<48x4xbf16>
    %cst = arith.constant 0.000000e+00 : bf16
    %17 = vector.broadcast %cst : bf16 to vector<1x4xbf16>
    %18 = vector.extract_strided_slice %16 {offsets = [0, 0], sizes = [47, 4], strides = [1, 1]} : vector<48x4xbf16> to vector<47x4xbf16>
    %19 = tpu.concatenate %17, %18 in 0 : vector<1x4xbf16>, vector<47x4xbf16> -> vector<48x4xbf16>
    %20 = tpu.concatenate %19, %16 in 1 : vector<48x4xbf16>, vector<48x4xbf16> -> vector<48x8xbf16>
    %c0_1 = arith.constant 0 : index
    %c0_2 = arith.constant 0 : index
    %21 = vector.load %arg2[%c0_1, %c0_2] : memref<1280x128xbf16, #tpu.memory_space<vmem>>, vector<8x32xbf16>
    %cst_3 = arith.constant dense<0.000000e+00> : vector<48x32xf32>
    %22 = tpu.matmul %20, %21, %cst_3 {dimension_numbers = #tpu.dot_dimension_numbers<[1], [0], [0], [1], [0, 0, 1, 1], [], []>} : vector<48x8xbf16>, vector<8x32xbf16>, vector<48x32xf32> -> vector<48x32xf32>
    %c0_4 = arith.constant 0 : index
    %c0_5 = arith.constant 0 : index
    %23 = vector.load %arg3[%c0_4, %c0_5] : memref<16x128xf32, #tpu.memory_space<vmem>>, vector<1x32xf32>
    %24 = vector.broadcast %23 : vector<1x32xf32> to vector<48x32xf32>
    %25 = arith.addf %22, %24 : vector<48x32xf32>
    %cst_6 = arith.constant 0.000000e+00 : f32
    %26 = vector.broadcast %cst_6 : f32 to vector<48x32xf32>
    %27 = arith.maximumf %25, %26 : vector<48x32xf32>
    %cst_7 = arith.constant 0.000000e+00 : f32
    %28 = vector.shape_cast %15 : vector<48x1xi1> to vector<48x1xi1>
    %29 = vector.broadcast %28 : vector<48x1xi1> to vector<48x32xi1>
    %30 = vector.broadcast %cst_7 : f32 to vector<48x32xf32>
    %31 = arith.select %29, %27, %30 : vector<48x32xi1>, vector<48x32xf32>
    %32 = arith.truncf %31 : vector<48x32xf32> to vector<48x32xbf16>
    %cst_8 = arith.constant 0.000000e+00 : bf16
    %33 = vector.broadcast %cst_8 : bf16 to vector<1x32xbf16>
    %34 = vector.extract_strided_slice %32 {offsets = [0, 0], sizes = [47, 32], strides = [1, 1]} : vector<48x32xbf16> to vector<47x32xbf16>
    %35 = tpu.concatenate %33, %34 in 0 : vector<1x32xbf16>, vector<47x32xbf16> -> vector<48x32xbf16>
    %36 = tpu.concatenate %35, %32 in 1 : vector<48x32xbf16>, vector<48x32xbf16> -> vector<48x64xbf16>
    %c16 = arith.constant 16 : index
    %c0_9 = arith.constant 0 : index
    %37 = vector.load %arg2[%c16, %c0_9] : memref<1280x128xbf16, #tpu.memory_space<vmem>>, vector<64x32xbf16>
    %cst_10 = arith.constant dense<0.000000e+00> : vector<48x32xf32>
    %38 = tpu.matmul %36, %37, %cst_10 {dimension_numbers = #tpu.dot_dimension_numbers<[1], [0], [0], [1], [0, 0, 1, 1], [], []>} : vector<48x64xbf16>, vector<64x32xbf16>, vector<48x32xf32> -> vector<48x32xf32>
    %c1 = arith.constant 1 : index
    %c0_11 = arith.constant 0 : index
    %39 = vector.load %arg3[%c1, %c0_11] : memref<16x128xf32, #tpu.memory_space<vmem>>, vector<1x32xf32>
    %40 = vector.broadcast %39 : vector<1x32xf32> to vector<48x32xf32>
    %41 = arith.addf %38, %40 : vector<48x32xf32>
    %cst_12 = arith.constant 0.000000e+00 : f32
    %42 = vector.broadcast %cst_12 : f32 to vector<48x32xf32>
    %43 = arith.maximumf %41, %42 : vector<48x32xf32>
    %cst_13 = arith.constant 0.000000e+00 : f32
    %44 = vector.shape_cast %15 : vector<48x1xi1> to vector<48x1xi1>
    %45 = vector.broadcast %44 : vector<48x1xi1> to vector<48x32xi1>
    %46 = vector.broadcast %cst_13 : f32 to vector<48x32xf32>
    %47 = arith.select %45, %43, %46 : vector<48x32xi1>, vector<48x32xf32>
    %48 = arith.truncf %47 : vector<48x32xf32> to vector<48x32xbf16>
    %cst_14 = arith.constant 0.000000e+00 : bf16
    %49 = vector.broadcast %cst_14 : bf16 to vector<1x32xbf16>
    %50 = vector.extract_strided_slice %48 {offsets = [0, 0], sizes = [47, 32], strides = [1, 1]} : vector<48x32xbf16> to vector<47x32xbf16>
    %51 = tpu.concatenate %49, %50 in 0 : vector<1x32xbf16>, vector<47x32xbf16> -> vector<48x32xbf16>
    %52 = tpu.concatenate %51, %48 in 1 : vector<48x32xbf16>, vector<48x32xbf16> -> vector<48x64xbf16>
    %c80 = arith.constant 80 : index
    %c0_15 = arith.constant 0 : index
    %53 = vector.load %arg2[%c80, %c0_15] : memref<1280x128xbf16, #tpu.memory_space<vmem>>, vector<64x64xbf16>
    %cst_16 = arith.constant dense<0.000000e+00> : vector<48x64xf32>
    %54 = tpu.matmul %52, %53, %cst_16 {dimension_numbers = #tpu.dot_dimension_numbers<[1], [0], [0], [1], [0, 0, 1, 1], [], []>} : vector<48x64xbf16>, vector<64x64xbf16>, vector<48x64xf32> -> vector<48x64xf32>
    %c2 = arith.constant 2 : index
    %c0_17 = arith.constant 0 : index
    %55 = vector.load %arg3[%c2, %c0_17] : memref<16x128xf32, #tpu.memory_space<vmem>>, vector<1x64xf32>
    %56 = vector.broadcast %55 : vector<1x64xf32> to vector<48x64xf32>
    %57 = arith.addf %54, %56 : vector<48x64xf32>
    %cst_18 = arith.constant 0.000000e+00 : f32
    %58 = vector.broadcast %cst_18 : f32 to vector<48x64xf32>
    %59 = arith.maximumf %57, %58 : vector<48x64xf32>
    %cst_19 = arith.constant 0.000000e+00 : f32
    %60 = vector.shape_cast %15 : vector<48x1xi1> to vector<48x1xi1>
    %61 = vector.broadcast %60 : vector<48x1xi1> to vector<48x64xi1>
    %62 = vector.broadcast %cst_19 : f32 to vector<48x64xf32>
    %63 = arith.select %61, %59, %62 : vector<48x64xi1>, vector<48x64xf32>
    %64 = arith.truncf %63 : vector<48x64xf32> to vector<48x64xbf16>
    %cst_20 = arith.constant 0.000000e+00 : bf16
    %65 = vector.broadcast %cst_20 : bf16 to vector<1x64xbf16>
    %66 = vector.extract_strided_slice %64 {offsets = [0, 0], sizes = [47, 64], strides = [1, 1]} : vector<48x64xbf16> to vector<47x64xbf16>
    %67 = tpu.concatenate %65, %66 in 0 : vector<1x64xbf16>, vector<47x64xbf16> -> vector<48x64xbf16>
    %68 = tpu.concatenate %67, %64 in 1 : vector<48x64xbf16>, vector<48x64xbf16> -> vector<48x128xbf16>
    %c144 = arith.constant 144 : index
    %c0_21 = arith.constant 0 : index
    %69 = vector.load %arg2[%c144, %c0_21] : memref<1280x128xbf16, #tpu.memory_space<vmem>>, vector<128x64xbf16>
    %cst_22 = arith.constant dense<0.000000e+00> : vector<48x64xf32>
    %70 = tpu.matmul %68, %69, %cst_22 {dimension_numbers = #tpu.dot_dimension_numbers<[1], [0], [0], [1], [0, 0, 1, 1], [], []>} : vector<48x128xbf16>, vector<128x64xbf16>, vector<48x64xf32> -> vector<48x64xf32>
    %c3 = arith.constant 3 : index
    %c0_23 = arith.constant 0 : index
    %71 = vector.load %arg3[%c3, %c0_23] : memref<16x128xf32, #tpu.memory_space<vmem>>, vector<1x64xf32>
    %72 = vector.broadcast %71 : vector<1x64xf32> to vector<48x64xf32>
    %73 = arith.addf %70, %72 : vector<48x64xf32>
    %cst_24 = arith.constant 0.000000e+00 : f32
    %74 = vector.shape_cast %15 : vector<48x1xi1> to vector<48x1xi1>
    %75 = vector.broadcast %74 : vector<48x1xi1> to vector<48x64xi1>
    %76 = vector.broadcast %cst_24 : f32 to vector<48x64xf32>
    %77 = arith.select %75, %73, %76 : vector<48x64xi1>, vector<48x64xf32>
    %cst_25 = arith.constant 0.000000e+00 : f32
    %78 = vector.broadcast %cst_25 : f32 to vector<48x32xf32>
    %79 = arith.truncf %77 : vector<48x64xf32> to vector<48x64xbf16>
    %cst_26 = arith.constant 0.000000e+00 : bf16
    %80 = vector.broadcast %cst_26 : bf16 to vector<1x64xbf16>
    %81 = vector.extract_strided_slice %79 {offsets = [0, 0], sizes = [47, 64], strides = [1, 1]} : vector<48x64xbf16> to vector<47x64xbf16>
    %82 = tpu.concatenate %80, %81 in 0 : vector<1x64xbf16>, vector<47x64xbf16> -> vector<48x64xbf16>
    %83 = tpu.concatenate %82, %79 in 1 : vector<48x64xbf16>, vector<48x64xbf16> -> vector<48x128xbf16>
    %c272 = arith.constant 272 : index
    %c0_27 = arith.constant 0 : index
    %84 = vector.load %arg2[%c272, %c0_27] : memref<1280x128xbf16, #tpu.memory_space<vmem>>, vector<128x64xbf16>
    %cst_28 = arith.constant dense<0.000000e+00> : vector<48x64xf32>
    %85 = tpu.matmul %83, %84, %cst_28 {dimension_numbers = #tpu.dot_dimension_numbers<[1], [0], [0], [1], [0, 0, 1, 1], [], []>} : vector<48x128xbf16>, vector<128x64xbf16>, vector<48x64xf32> -> vector<48x64xf32>
    %c4 = arith.constant 4 : index
    %c0_29 = arith.constant 0 : index
    %86 = vector.load %arg3[%c4, %c0_29] : memref<16x128xf32, #tpu.memory_space<vmem>>, vector<1x64xf32>
    %87 = vector.broadcast %86 : vector<1x64xf32> to vector<48x64xf32>
    %88 = arith.addf %85, %87 : vector<48x64xf32>
    %89 = math.tanh %88 : vector<48x64xf32>
    %90 = arith.negf %88 : vector<48x64xf32>
    %91 = math.exp %90 : vector<48x64xf32>
    %cst_30 = arith.constant 1.000000e+00 : f32
    %92 = vector.broadcast %cst_30 : f32 to vector<48x64xf32>
    %93 = arith.addf %92, %91 : vector<48x64xf32>
    %94 = arith.divf %92, %93 : vector<48x64xf32>
    %95 = arith.mulf %89, %94 : vector<48x64xf32>
    %96 = arith.truncf %95 : vector<48x64xf32> to vector<48x64xbf16>
    %c912 = arith.constant 912 : index
    %c0_31 = arith.constant 0 : index
    %97 = vector.load %arg2[%c912, %c0_31] : memref<1280x128xbf16, #tpu.memory_space<vmem>>, vector<64x96xbf16>
    %cst_32 = arith.constant dense<0.000000e+00> : vector<48x96xf32>
    %98 = tpu.matmul %96, %97, %cst_32 {dimension_numbers = #tpu.dot_dimension_numbers<[1], [0], [0], [1], [0, 0, 1, 1], [], []>} : vector<48x64xbf16>, vector<64x96xbf16>, vector<48x96xf32> -> vector<48x96xf32>
    %c9 = arith.constant 9 : index
    %c0_33 = arith.constant 0 : index
    %99 = vector.load %arg3[%c9, %c0_33] : memref<16x128xf32, #tpu.memory_space<vmem>>, vector<1x96xf32>
    %100 = vector.broadcast %99 : vector<1x96xf32> to vector<48x96xf32>
    %101 = arith.addf %98, %100 : vector<48x96xf32>
    %102 = vector.extract_strided_slice %101 {offsets = [0, 0], sizes = [48, 64], strides = [1, 1]} : vector<48x96xf32> to vector<48x64xf32>
    %103 = arith.addf %77, %102 : vector<48x64xf32>
    %104 = vector.extract_strided_slice %101 {offsets = [0, 64], sizes = [48, 32], strides = [1, 1]} : vector<48x96xf32> to vector<48x32xf32>
    %105 = arith.addf %78, %104 : vector<48x32xf32>
    %106 = arith.truncf %103 : vector<48x64xf32> to vector<48x64xbf16>
    %cst_34 = arith.constant 0.000000e+00 : bf16
    %107 = vector.broadcast %cst_34 : bf16 to vector<1x64xbf16>
    %108 = vector.extract_strided_slice %106 {offsets = [0, 0], sizes = [47, 64], strides = [1, 1]} : vector<48x64xbf16> to vector<47x64xbf16>
    %109 = tpu.concatenate %107, %108 in 0 : vector<1x64xbf16>, vector<47x64xbf16> -> vector<48x64xbf16>
    %110 = tpu.concatenate %109, %106 in 1 : vector<48x64xbf16>, vector<48x64xbf16> -> vector<48x128xbf16>
    %c400 = arith.constant 400 : index
    %c0_35 = arith.constant 0 : index
    %111 = vector.load %arg2[%c400, %c0_35] : memref<1280x128xbf16, #tpu.memory_space<vmem>>, vector<128x64xbf16>
    %cst_36 = arith.constant dense<0.000000e+00> : vector<48x64xf32>
    %112 = tpu.matmul %110, %111, %cst_36 {dimension_numbers = #tpu.dot_dimension_numbers<[1], [0], [0], [1], [0, 0, 1, 1], [], []>} : vector<48x128xbf16>, vector<128x64xbf16>, vector<48x64xf32> -> vector<48x64xf32>
    %c5 = arith.constant 5 : index
    %c0_37 = arith.constant 0 : index
    %113 = vector.load %arg3[%c5, %c0_37] : memref<16x128xf32, #tpu.memory_space<vmem>>, vector<1x64xf32>
    %114 = vector.broadcast %113 : vector<1x64xf32> to vector<48x64xf32>
    %115 = arith.addf %112, %114 : vector<48x64xf32>
    %116 = math.tanh %115 : vector<48x64xf32>
    %117 = arith.negf %115 : vector<48x64xf32>
    %118 = math.exp %117 : vector<48x64xf32>
    %cst_38 = arith.constant 1.000000e+00 : f32
    %119 = vector.broadcast %cst_38 : f32 to vector<48x64xf32>
    %120 = arith.addf %119, %118 : vector<48x64xf32>
    %121 = arith.divf %119, %120 : vector<48x64xf32>
    %122 = arith.mulf %116, %121 : vector<48x64xf32>
    %123 = arith.truncf %122 : vector<48x64xf32> to vector<48x64xbf16>
    %c976 = arith.constant 976 : index
    %c0_39 = arith.constant 0 : index
    %124 = vector.load %arg2[%c976, %c0_39] : memref<1280x128xbf16, #tpu.memory_space<vmem>>, vector<64x96xbf16>
    %cst_40 = arith.constant dense<0.000000e+00> : vector<48x96xf32>
    %125 = tpu.matmul %123, %124, %cst_40 {dimension_numbers = #tpu.dot_dimension_numbers<[1], [0], [0], [1], [0, 0, 1, 1], [], []>} : vector<48x64xbf16>, vector<64x96xbf16>, vector<48x96xf32> -> vector<48x96xf32>
    %c10 = arith.constant 10 : index
    %c0_41 = arith.constant 0 : index
    %126 = vector.load %arg3[%c10, %c0_41] : memref<16x128xf32, #tpu.memory_space<vmem>>, vector<1x96xf32>
    %127 = vector.broadcast %126 : vector<1x96xf32> to vector<48x96xf32>
    %128 = arith.addf %125, %127 : vector<48x96xf32>
    %129 = vector.extract_strided_slice %128 {offsets = [0, 0], sizes = [48, 64], strides = [1, 1]} : vector<48x96xf32> to vector<48x64xf32>
    %130 = arith.addf %103, %129 : vector<48x64xf32>
    %131 = vector.extract_strided_slice %128 {offsets = [0, 64], sizes = [48, 32], strides = [1, 1]} : vector<48x96xf32> to vector<48x32xf32>
    %132 = arith.addf %105, %131 : vector<48x32xf32>
    %133 = arith.truncf %130 : vector<48x64xf32> to vector<48x64xbf16>
    %cst_42 = arith.constant 0.000000e+00 : bf16
    %134 = vector.broadcast %cst_42 : bf16 to vector<2x64xbf16>
    %135 = vector.extract_strided_slice %133 {offsets = [0, 0], sizes = [46, 64], strides = [1, 1]} : vector<48x64xbf16> to vector<46x64xbf16>
    %136 = tpu.concatenate %134, %135 in 0 : vector<2x64xbf16>, vector<46x64xbf16> -> vector<48x64xbf16>
    %137 = tpu.concatenate %136, %133 in 1 : vector<48x64xbf16>, vector<48x64xbf16> -> vector<48x128xbf16>
    %c528 = arith.constant 528 : index
    %c0_43 = arith.constant 0 : index
    %138 = vector.load %arg2[%c528, %c0_43] : memref<1280x128xbf16, #tpu.memory_space<vmem>>, vector<128x64xbf16>
    %cst_44 = arith.constant dense<0.000000e+00> : vector<48x64xf32>
    %139 = tpu.matmul %137, %138, %cst_44 {dimension_numbers = #tpu.dot_dimension_numbers<[1], [0], [0], [1], [0, 0, 1, 1], [], []>} : vector<48x128xbf16>, vector<128x64xbf16>, vector<48x64xf32> -> vector<48x64xf32>
    %c6 = arith.constant 6 : index
    %c0_45 = arith.constant 0 : index
    %140 = vector.load %arg3[%c6, %c0_45] : memref<16x128xf32, #tpu.memory_space<vmem>>, vector<1x64xf32>
    %141 = vector.broadcast %140 : vector<1x64xf32> to vector<48x64xf32>
    %142 = arith.addf %139, %141 : vector<48x64xf32>
    %143 = math.tanh %142 : vector<48x64xf32>
    %144 = arith.negf %142 : vector<48x64xf32>
    %145 = math.exp %144 : vector<48x64xf32>
    %cst_46 = arith.constant 1.000000e+00 : f32
    %146 = vector.broadcast %cst_46 : f32 to vector<48x64xf32>
    %147 = arith.addf %146, %145 : vector<48x64xf32>
    %148 = arith.divf %146, %147 : vector<48x64xf32>
    %149 = arith.mulf %143, %148 : vector<48x64xf32>
    %150 = arith.truncf %149 : vector<48x64xf32> to vector<48x64xbf16>
    %c1040 = arith.constant 1040 : index
    %c0_47 = arith.constant 0 : index
    %151 = vector.load %arg2[%c1040, %c0_47] : memref<1280x128xbf16, #tpu.memory_space<vmem>>, vector<64x96xbf16>
    %cst_48 = arith.constant dense<0.000000e+00> : vector<48x96xf32>
    %152 = tpu.matmul %150, %151, %cst_48 {dimension_numbers = #tpu.dot_dimension_numbers<[1], [0], [0], [1], [0, 0, 1, 1], [], []>} : vector<48x64xbf16>, vector<64x96xbf16>, vector<48x96xf32> -> vector<48x96xf32>
    %c11 = arith.constant 11 : index
    %c0_49 = arith.constant 0 : index
    %153 = vector.load %arg3[%c11, %c0_49] : memref<16x128xf32, #tpu.memory_space<vmem>>, vector<1x96xf32>
    %154 = vector.broadcast %153 : vector<1x96xf32> to vector<48x96xf32>
    %155 = arith.addf %152, %154 : vector<48x96xf32>
    %156 = vector.extract_strided_slice %155 {offsets = [0, 0], sizes = [48, 64], strides = [1, 1]} : vector<48x96xf32> to vector<48x64xf32>
    %157 = arith.addf %130, %156 : vector<48x64xf32>
    %158 = vector.extract_strided_slice %155 {offsets = [0, 64], sizes = [48, 32], strides = [1, 1]} : vector<48x96xf32> to vector<48x32xf32>
    %159 = arith.addf %132, %158 : vector<48x32xf32>
    %160 = arith.truncf %157 : vector<48x64xf32> to vector<48x64xbf16>
    %cst_50 = arith.constant 0.000000e+00 : bf16
    %161 = vector.broadcast %cst_50 : bf16 to vector<4x64xbf16>
    %162 = vector.extract_strided_slice %160 {offsets = [0, 0], sizes = [44, 64], strides = [1, 1]} : vector<48x64xbf16> to vector<44x64xbf16>
    %163 = tpu.concatenate %161, %162 in 0 : vector<4x64xbf16>, vector<44x64xbf16> -> vector<48x64xbf16>
    %164 = tpu.concatenate %163, %160 in 1 : vector<48x64xbf16>, vector<48x64xbf16> -> vector<48x128xbf16>
    %c656 = arith.constant 656 : index
    %c0_51 = arith.constant 0 : index
    %165 = vector.load %arg2[%c656, %c0_51] : memref<1280x128xbf16, #tpu.memory_space<vmem>>, vector<128x64xbf16>
    %cst_52 = arith.constant dense<0.000000e+00> : vector<48x64xf32>
    %166 = tpu.matmul %164, %165, %cst_52 {dimension_numbers = #tpu.dot_dimension_numbers<[1], [0], [0], [1], [0, 0, 1, 1], [], []>} : vector<48x128xbf16>, vector<128x64xbf16>, vector<48x64xf32> -> vector<48x64xf32>
    %c7 = arith.constant 7 : index
    %c0_53 = arith.constant 0 : index
    %167 = vector.load %arg3[%c7, %c0_53] : memref<16x128xf32, #tpu.memory_space<vmem>>, vector<1x64xf32>
    %168 = vector.broadcast %167 : vector<1x64xf32> to vector<48x64xf32>
    %169 = arith.addf %166, %168 : vector<48x64xf32>
    %170 = math.tanh %169 : vector<48x64xf32>
    %171 = arith.negf %169 : vector<48x64xf32>
    %172 = math.exp %171 : vector<48x64xf32>
    %cst_54 = arith.constant 1.000000e+00 : f32
    %173 = vector.broadcast %cst_54 : f32 to vector<48x64xf32>
    %174 = arith.addf %173, %172 : vector<48x64xf32>
    %175 = arith.divf %173, %174 : vector<48x64xf32>
    %176 = arith.mulf %170, %175 : vector<48x64xf32>
    %177 = arith.truncf %176 : vector<48x64xf32> to vector<48x64xbf16>
    %c1104 = arith.constant 1104 : index
    %c0_55 = arith.constant 0 : index
    %178 = vector.load %arg2[%c1104, %c0_55] : memref<1280x128xbf16, #tpu.memory_space<vmem>>, vector<64x96xbf16>
    %cst_56 = arith.constant dense<0.000000e+00> : vector<48x96xf32>
    %179 = tpu.matmul %177, %178, %cst_56 {dimension_numbers = #tpu.dot_dimension_numbers<[1], [0], [0], [1], [0, 0, 1, 1], [], []>} : vector<48x64xbf16>, vector<64x96xbf16>, vector<48x96xf32> -> vector<48x96xf32>
    %c12 = arith.constant 12 : index
    %c0_57 = arith.constant 0 : index
    %180 = vector.load %arg3[%c12, %c0_57] : memref<16x128xf32, #tpu.memory_space<vmem>>, vector<1x96xf32>
    %181 = vector.broadcast %180 : vector<1x96xf32> to vector<48x96xf32>
    %182 = arith.addf %179, %181 : vector<48x96xf32>
    %183 = vector.extract_strided_slice %182 {offsets = [0, 0], sizes = [48, 64], strides = [1, 1]} : vector<48x96xf32> to vector<48x64xf32>
    %184 = arith.addf %157, %183 : vector<48x64xf32>
    %185 = vector.extract_strided_slice %182 {offsets = [0, 64], sizes = [48, 32], strides = [1, 1]} : vector<48x96xf32> to vector<48x32xf32>
    %186 = arith.addf %159, %185 : vector<48x32xf32>
    %187 = arith.truncf %184 : vector<48x64xf32> to vector<48x64xbf16>
    %cst_58 = arith.constant 0.000000e+00 : bf16
    %188 = vector.broadcast %cst_58 : bf16 to vector<8x64xbf16>
    %189 = vector.extract_strided_slice %187 {offsets = [0, 0], sizes = [40, 64], strides = [1, 1]} : vector<48x64xbf16> to vector<40x64xbf16>
    %190 = tpu.concatenate %188, %189 in 0 : vector<8x64xbf16>, vector<40x64xbf16> -> vector<48x64xbf16>
    %191 = tpu.concatenate %190, %187 in 1 : vector<48x64xbf16>, vector<48x64xbf16> -> vector<48x128xbf16>
    %c784 = arith.constant 784 : index
    %c0_59 = arith.constant 0 : index
    %192 = vector.load %arg2[%c784, %c0_59] : memref<1280x128xbf16, #tpu.memory_space<vmem>>, vector<128x64xbf16>
    %cst_60 = arith.constant dense<0.000000e+00> : vector<48x64xf32>
    %193 = tpu.matmul %191, %192, %cst_60 {dimension_numbers = #tpu.dot_dimension_numbers<[1], [0], [0], [1], [0, 0, 1, 1], [], []>} : vector<48x128xbf16>, vector<128x64xbf16>, vector<48x64xf32> -> vector<48x64xf32>
    %c8 = arith.constant 8 : index
    %c0_61 = arith.constant 0 : index
    %194 = vector.load %arg3[%c8, %c0_61] : memref<16x128xf32, #tpu.memory_space<vmem>>, vector<1x64xf32>
    %195 = vector.broadcast %194 : vector<1x64xf32> to vector<48x64xf32>
    %196 = arith.addf %193, %195 : vector<48x64xf32>
    %197 = math.tanh %196 : vector<48x64xf32>
    %198 = arith.negf %196 : vector<48x64xf32>
    %199 = math.exp %198 : vector<48x64xf32>
    %cst_62 = arith.constant 1.000000e+00 : f32
    %200 = vector.broadcast %cst_62 : f32 to vector<48x64xf32>
    %201 = arith.addf %200, %199 : vector<48x64xf32>
    %202 = arith.divf %200, %201 : vector<48x64xf32>
    %203 = arith.mulf %197, %202 : vector<48x64xf32>
    %204 = arith.truncf %203 : vector<48x64xf32> to vector<48x64xbf16>
    %c1168 = arith.constant 1168 : index
    %c0_63 = arith.constant 0 : index
    %205 = vector.load %arg2[%c1168, %c0_63] : memref<1280x128xbf16, #tpu.memory_space<vmem>>, vector<64x96xbf16>
    %cst_64 = arith.constant dense<0.000000e+00> : vector<48x96xf32>
    %206 = tpu.matmul %204, %205, %cst_64 {dimension_numbers = #tpu.dot_dimension_numbers<[1], [0], [0], [1], [0, 0, 1, 1], [], []>} : vector<48x64xbf16>, vector<64x96xbf16>, vector<48x96xf32> -> vector<48x96xf32>
    %c13 = arith.constant 13 : index
    %c0_65 = arith.constant 0 : index
    %207 = vector.load %arg3[%c13, %c0_65] : memref<16x128xf32, #tpu.memory_space<vmem>>, vector<1x96xf32>
    %208 = vector.broadcast %207 : vector<1x96xf32> to vector<48x96xf32>
    %209 = arith.addf %206, %208 : vector<48x96xf32>
    %210 = vector.extract_strided_slice %209 {offsets = [0, 64], sizes = [48, 32], strides = [1, 1]} : vector<48x96xf32> to vector<48x32xf32>
    %211 = arith.addf %186, %210 : vector<48x32xf32>
    %cst_66 = arith.constant 0.000000e+00 : f32
    %212 = vector.broadcast %cst_66 : f32 to vector<48x32xf32>
    %213 = arith.maximumf %211, %212 : vector<48x32xf32>
    %214 = arith.truncf %213 : vector<48x32xf32> to vector<48x32xbf16>
    %c1232 = arith.constant 1232 : index
    %c0_67 = arith.constant 0 : index
    %215 = vector.load %arg2[%c1232, %c0_67] : memref<1280x128xbf16, #tpu.memory_space<vmem>>, vector<32x16xbf16>
    %cst_68 = arith.constant dense<0.000000e+00> : vector<48x16xf32>
    %216 = tpu.matmul %214, %215, %cst_68 {dimension_numbers = #tpu.dot_dimension_numbers<[1], [0], [0], [1], [0, 0, 1, 1], [], []>} : vector<48x32xbf16>, vector<32x16xbf16>, vector<48x16xf32> -> vector<48x16xf32>
    %c14 = arith.constant 14 : index
    %c0_69 = arith.constant 0 : index
    %217 = vector.load %arg3[%c14, %c0_69] : memref<16x128xf32, #tpu.memory_space<vmem>>, vector<1x16xf32>
    %218 = vector.broadcast %217 : vector<1x16xf32> to vector<48x16xf32>
    %219 = arith.addf %216, %218 : vector<48x16xf32>
    %cst_70 = arith.constant 0.000000e+00 : f32
    %220 = vector.broadcast %cst_70 : f32 to vector<48x16xf32>
    %221 = arith.maximumf %219, %220 : vector<48x16xf32>
    %222 = arith.truncf %221 : vector<48x16xf32> to vector<48x16xbf16>
    %c1264 = arith.constant 1264 : index
    %c0_71 = arith.constant 0 : index
    %223 = vector.load %arg2[%c1264, %c0_71] : memref<1280x128xbf16, #tpu.memory_space<vmem>>, vector<16x1xbf16>
    %cst_72 = arith.constant dense<0.000000e+00> : vector<48x1xf32>
    %224 = tpu.matmul %222, %223, %cst_72 {dimension_numbers = #tpu.dot_dimension_numbers<[1], [0], [0], [1], [0, 0, 1, 1], [], []>} : vector<48x16xbf16>, vector<16x1xbf16>, vector<48x1xf32> -> vector<48x1xf32>
    %c15 = arith.constant 15 : index
    %c0_73 = arith.constant 0 : index
    %225 = vector.load %arg3[%c15, %c0_73] : memref<16x128xf32, #tpu.memory_space<vmem>>, vector<1x1xf32>
    %226 = vector.broadcast %225 : vector<1x1xf32> to vector<48x1xf32>
    %227 = arith.addf %224, %226 : vector<48x1xf32>
    %c0_74 = arith.constant 0 : index
    %c0_75 = arith.constant 0 : index
    %228 = vector.load %arg4[%c0_74, %c0_75] : memref<48x1xf32, #tpu.memory_space<vmem>>, vector<48x1xf32>
    tpu.vector_store %arg4[%c0_74, %c0_75], %227 {strides = array<i32>} : memref<48x1xf32, #tpu.memory_space<vmem>>, vector<48x1xf32>,
    return
  }
  func.func @transform_0(%arg0: i32) -> (i32, i32) {
    %c0_i32 = arith.constant 0 : i32
    %c0_i32_0 = arith.constant 0 : i32
    %c0_i32_1 = arith.constant 0 : i32
    return %c0_i32, %c0_i32_0 : i32, i32
  }
  func.func @transform_1(%arg0: i32) -> (i32, i32) {
    %c0_i32 = arith.constant 0 : i32
    %c0_i32_0 = arith.constant 0 : i32
    %c0_i32_1 = arith.constant 0 : i32
    return %c0_i32, %c0_i32_0 : i32, i32
  }
  func.func @transform_2(%arg0: i32) -> (i32, i32) {
    %c0_i32 = arith.constant 0 : i32
    %c0_i32_0 = arith.constant 0 : i32
    %c0_i32_1 = arith.constant 0 : i32
    return %c0_i32, %c0_i32_0 : i32, i32
  }
  func.func @transform_3(%arg0: i32) -> (i32, i32) {
    %c0_i32 = arith.constant 0 : i32
    %c0_i32_0 = arith.constant 0 : i32
    %c0_i32_1 = arith.constant 0 : i32
    return %c0_i32, %c0_i32_0 : i32, i32
  }
}

</mosaic_0001>

<llo_original>
// kernel: glunet_pallas.1
$region0: #{glunet_pallas.1}
  #allocation0 [shape = 'u32[]', space=smem, size = 0x4, offset = 0x4, fixed_abs, tag = 'smem constant byte address 0x4 - core index']
  #allocation1 [shape = 'u32[144,128]{1,0:T(1,128)}', space=vmem, size = 0x12000, scoped, tag = 'internal scratch']
  %s0 = inlined_call_operand.vmem [shape: f32[48,4], index: 0, kind: input, shape index: {}]
  %s1 = inlined_call_operand.vmem [shape: bf16[1280,128], index: 1, kind: input, shape index: {}]
  %s2 = inlined_call_operand.vmem [shape: f32[16,128], index: 2, kind: input, shape index: {}]
  %s3 = inlined_call_operand.vmem [shape: f32[48,1], index: 3, kind: output, shape index: {}]
  %s4 = sld [smem:[#allocation0]]
  $region22: #{glunet_pallas.1} parent=0
    _
  %s6 = ssub.s32 1, %s4
  %s7 = scalar_select 0, %s6, %s4
  // Predicated region
  $region2: #{glunet_pallas.1} parent=0 // pred_check
    _
  $region3: #{glunet_pallas.1} parent=0 // pred_check_branch
    %9 = sbr.rel (0) target = $region5
  $region4: #{glunet_pallas.1} parent=0 // pred_region
    _
  $region5: #{glunet_pallas.1} parent=0 // pred_fallthru
    _
  // Predicated region
  $region6: #{glunet_pallas.1} parent=0 // pred_check
    _
  $region7: #{glunet_pallas.1} parent=0 // pred_check_branch
    %11 = sbr.rel (0) target = $region9
  $region8: #{glunet_pallas.1} parent=0 // pred_region
    _
  $region9: #{glunet_pallas.1} parent=0 // pred_fallthru
    _
  // Predicated region
  $region10: #{glunet_pallas.1} parent=0 // pred_check
    _
  $region11: #{glunet_pallas.1} parent=0 // pred_check_branch
    %13 = sbr.rel (0) target = $region13
  $region12: #{glunet_pallas.1} parent=0 // pred_region
    _
  $region13: #{glunet_pallas.1} parent=0 // pred_fallthru
    _
  %v15 = vld [vmem:[%s0] sm:$0xff]
  %v16 = vld [vmem:[%s0 + $0x8] sm:$0xff]
  %v17 = vld [vmem:[%s0 + $0x10] sm:$0xff]
  %v18 = vld [vmem:[%s0 + $0x18] sm:$0xff]
  %v19 = vld [vmem:[%s0 + $0x20] sm:$0xff]
  %v20 = vld [vmem:[%s0 + $0x28] sm:$0xff]
  %v21 = vlaneseq
  %v22 = vshrl.u32 %v21, 7
  %v23 = vadd.s32 %v22, 8
  %v24 = vadd.s32 %v22, 16
  %v25 = vadd.s32 %v22, 24
  %v26 = vadd.s32 %v22, 32
  %v27 = vadd.s32 %v22, 40
  %vm28 = vcmp.lt.s32.totalorder %v22, 0
  %vm29 = vcmp.lt.s32.totalorder %v23, 0
  %vm30 = vcmp.lt.s32.totalorder %v24, 0
  %vm31 = vcmp.lt.s32.totalorder %v25, 0
  %vm32 = vcmp.lt.s32.totalorder %v26, 0
  %vm33 = vcmp.lt.s32.totalorder %v27, 0
  %vm34 = vcmp.ge.s32.totalorder %v22, 8
  %vm35 = vcmp.ge.s32.totalorder %v23, 8
  %vm36 = vcmp.ge.s32.totalorder %v24, 8
  %vm37 = vcmp.ge.s32.totalorder %v25, 8
  %vm38 = vcmp.ge.s32.totalorder %v26, 8
  %vm39 = vcmp.ge.s32.totalorder %v27, 8
  %vm40 = vcmp.lt.s32.totalorder %v22, 24
  %vm41 = vcmp.lt.s32.totalorder %v23, 24
  %vm42 = vcmp.lt.s32.totalorder %v24, 24
  %vm43 = vcmp.lt.s32.totalorder %v25, 24
  %vm44 = vcmp.lt.s32.totalorder %v26, 24
  %vm45 = vcmp.lt.s32.totalorder %v27, 24
  %vm46 = vmand %vm34, %vm40
  %vm47 = vmand %vm35, %vm41
  %vm48 = vmand %vm36, %vm42
  %vm49 = vmand %vm37, %vm43
  %vm50 = vmand %vm38, %vm44
  %vm51 = vmand %vm39, %vm45
  %vm52 = vmor %vm28, %vm46
  %vm53 = vmor %vm29, %vm47
  %vm54 = vmor %vm30, %vm48
  %vm55 = vmor %vm31, %vm49
  %vm56 = vmor %vm32, %vm50
  %vm57 = vmor %vm33, %vm51
  %vm58 = vcmp.ge.s32.totalorder %v22, 32
  %vm59 = vcmp.ge.s32.totalorder %v23, 32
  %vm60 = vcmp.ge.s32.totalorder %v24, 32
  %vm61 = vcmp.ge.s32.totalorder %v25, 32
  %vm62 = vcmp.ge.s32.totalorder %v26, 32
  %vm63 = vcmp.ge.s32.totalorder %v27, 32
  %vm64 = vcmp.lt.s32.totalorder %v22, 48
  %vm65 = vcmp.lt.s32.totalorder %v23, 48
  %vm66 = vcmp.lt.s32.totalorder %v24, 48
  %vm67 = vcmp.lt.s32.totalorder %v25, 48
  %vm68 = vcmp.lt.s32.totalorder %v26, 48
  %vm69 = vcmp.lt.s32.totalorder %v27, 48
  %vm70 = vmand %vm58, %vm64
  %vm71 = vmand %vm59, %vm65
  %vm72 = vmand %vm60, %vm66
  %vm73 = vmand %vm61, %vm67
  %vm74 = vmand %vm62, %vm68
  %vm75 = vmand %vm63, %vm69
  %vm76 = vmor %vm52, %vm70
  %vm77 = vmor %vm53, %vm71
  %vm78 = vmor %vm54, %vm72
  %vm79 = vmor %vm55, %vm73
  %vm80 = vmor %vm56, %vm74
  %vm81 = vmor %vm57, %vm75
  %v82 = vpack.c.bf16 %v16, %v15
  %v83 = vpack.c.bf16 %v18, %v17
  %v84 = vpack.c.bf16 %v20, %v19
  %vm85 = vsmask.f32 256
  %v87 = vshrl.u32 %v82, 16
  %v89 = vrot.slane %v87, 7
  %v90 = vshll.u32 %v82, 16
  %v92 = vor.u32 %v89, %v90
  %v94 = vshrl.u32 %v83, 16
  %v96 = vrot.slane %v94, 7
  %v97 = vshll.u32 %v83, 16
  %v99 = vor.u32 %v96, %v97
  %v100 = vsel %vm85, %v89, %v99
  %v102 = vshrl.u32 %v84, 16
  %v104 = vrot.slane %v102, 7
  %v105 = vshll.u32 %v84, 16
  %v107 = vor.u32 %v104, %v105
  %v108 = vsel %vm85, %v96, %v107
  %vm110 = vcmask 1040384
  %vm111 = vmand %vm110, %vm85
  %v112 = vsel %vm111, 0, %v92
  %116 = vrot.lane.b32.xlu0 %v82, 4
  %v117 = vpop.permute.xlu0 %116
  %118 = vrot.lane.b32.xlu0 %v83, 4
  %v119 = vpop.permute.xlu0 %118
  %120 = vrot.lane.b32.xlu0 %v84, 4
  %v121 = vpop.permute.xlu0 %120
  %vm122 = vcmask 31744
  %v125 = vsel %vm122, %v112, %v117
  %v128 = vsel %vm122, %v100, %v119
  %v131 = vsel %vm122, %v108, %v121
  %v132 = vld [vmem:[%s1] sm:$0xf]
  %v133 = vld [vmem:[%s2] sm:$0x1]
  %v134 = vlaneseq
  %v135 = vshrl.u32 %v134, 7
  %v136 = vsub.s32 0, %v135
  %v137 = vrot.slane %v133, %v136
  %vm138 = vcmask 64512
  %v139 = vsel %vm138, %v125, 0
  %v141 = vsel %vm138, %v128, 0
  %v143 = vsel %vm138, %v131, 0
  %vm145 = vcmask 1043456
  %v147 = vsel %vm145, %v132, 0
  %149 = vmatprep.subr.bf16.mxu0 0
  %150 = vmatpush1.bf16.msra.mxu0 %v147
  %151 = vmatprep.subr.bf16.mxu0 0
  %152 = vmatpush1.bf16.msra.mxu0 0
  %153 = vmatprep.subr.bf16.mxu0 0
  %154 = vmatpush1.bf16.msra.mxu0 0
  %155 = vmatprep.subr.bf16.mxu0 0
  %156 = vmatpush1.bf16.msra.mxu0 0
  %157 = vmatprep.subr.bf16.mxu0 0
  %158 = vmatpush1.bf16.msra.mxu0 0
  %159 = vmatprep.subr.bf16.mxu0 0
  %160 = vmatpush1.bf16.msra.mxu0 0
  %161 = vmatprep.subr.bf16.mxu0 0
  %162 = vmatpush1.bf16.msra.mxu0 0
  %163 = vmatprep.subr.bf16.mxu0 0
  %164 = vmatpush1.bf16.msra.mxu0 0
  %165 = vmatprep.subr.bf16.mxu0 0
  %166 = vmatpush1.bf16.msra.mxu0 0
  %167 = vmatprep.subr.bf16.mxu0 0
  %168 = vmatpush1.bf16.msra.mxu0 0
  %169 = vmatprep.subr.bf16.mxu0 0
  %170 = vmatpush1.bf16.msra.mxu0 0
  %171 = vmatprep.subr.bf16.mxu0 0
  %172 = vmatpush1.bf16.msra.mxu0 0
  %173 = vmatprep.subr.bf16.mxu0 0
  %174 = vmatpush1.bf16.msra.mxu0 0
  %175 = vmatprep.subr.bf16.mxu0 0
  %176 = vmatpush1.bf16.msra.mxu0 0
  %177 = vmatprep.subr.bf16.mxu0 0
  %178 = vmatpush1.bf16.msra.mxu0 0
  %179 = vmatprep.subr.bf16.mxu0 0
  %180 = vmatpush1.bf16.msra.mxu0 0
  %181 = vmatprep.mubr.bf16.mxu0 0
  %182 = vmatmul.mubr.bf16.gmra.mrb[0].mxu0 %v139
  %v183 = vpop.f32.mrb[0].mxu0
  %v184 = vadd.f32 %v137, %v183
  %v185 = vpop.f32.mrb[0].mxu0
  %v186 = vpop.f32.mrb[0].mxu0
  %v187 = vadd.f32 %v137, %v186
  %v188 = vpop.f32.mrb[0].mxu0
  %189 = vmatprep.mubr.bf16.mxu0 0
  %190 = vmatmul.mubr.bf16.gmra.mrb[0].mxu0 %v141
  %v191 = vpop.f32.mrb[0].mxu0
  %v192 = vadd.f32 %v137, %v191
  %v193 = vpop.f32.mrb[0].mxu0
  %v194 = vpop.f32.mrb[0].mxu0
  %v195 = vadd.f32 %v137, %v194
  %v196 = vpop.f32.mrb[0].mxu0
  %197 = vmatprep.mubr.bf16.mxu0 0
  %198 = vmatmul.mubr.bf16.gmra.mrb[0].mxu0 %v143
  %v199 = vpop.f32.mrb[0].mxu0
  %v200 = vadd.f32 %v137, %v199
  %v201 = vpop.f32.mrb[0].mxu0
  %v202 = vpop.f32.mrb[0].mxu0
  %v203 = vadd.f32 %v137, %v202
  %v204 = vpop.f32.mrb[0].mxu0
  %205 = vdwg.mxu0
  %v206 = vmax.f32 %v184, 0.0
  %v207 = vmax.f32 %v187, 0.0
  %v208 = vmax.f32 %v192, 0.0
  %v209 = vmax.f32 %v195, 0.0
  %v210 = vmax.f32 %v200, 0.0
  %v211 = vmax.f32 %v203, 0.0
  %v212 = vsel %vm76, 1, 0
  %v213 = vsel %vm77, 1, 0
  %v214 = vsel %vm78, 1, 0
  %v215 = vsel %vm79, 1, 0
  %v216 = vsel %vm80, 1, 0
  %v217 = vsel %vm81, 1, 0
  %vm218 = vcmp.eq.s32.totalorder %v212, 1
  %vm219 = vcmp.eq.s32.totalorder %v213, 1
  %vm220 = vcmp.eq.s32.totalorder %v214, 1
  %vm221 = vcmp.eq.s32.totalorder %v215, 1
  %vm222 = vcmp.eq.s32.totalorder %v216, 1
  %vm223 = vcmp.eq.s32.totalorder %v217, 1
  %v224 = vsel %vm218, %v206, 0.0
  %v225 = vsel %vm219, %v207, 0.0
  %v226 = vsel %vm220, %v208, 0.0
  %v227 = vsel %vm221, %v209, 0.0
  %v228 = vsel %vm222, %v210, 0.0
  %v229 = vsel %vm223, %v211, 0.0
  %v230 = vpack.c.bf16 %v225, %v224
  %v231 = vpack.c.bf16 %v227, %v226
  %v232 = vpack.c.bf16 %v229, %v228
  %v234 = vshrl.u32 %v230, 16
  %v236 = vrot.slane %v234, 7
  %v237 = vshll.u32 %v230, 16
  %v239 = vor.u32 %v236, %v237
  %v241 = vshrl.u32 %v231, 16
  %v243 = vrot.slane %v241, 7
  %v244 = vshll.u32 %v231, 16
  %v246 = vor.u32 %v243, %v244
  %v247 = vsel %vm85, %v236, %v246
  %v249 = vshrl.u32 %v232, 16
  %v251 = vrot.slane %v249, 7
  %v252 = vshll.u32 %v232, 16
  %v254 = vor.u32 %v251, %v252
  %v255 = vsel %vm85, %v243, %v254
  %v257 = vsel %vm111, 0, %v239
  %261 = vrot.lane.b32.xlu0 %v230, 32
  %v262 = vpop.permute.xlu0 %261
  %263 = vrot.lane.b32.xlu0 %v231, 32
  %v264 = vpop.permute.xlu0 %263
  %265 = vrot.lane.b32.xlu0 %v232, 32
  %v266 = vpop.permute.xlu0 %265
  %vm267 = vcmask 261120
  %v270 = vsel %vm267, %v257, %v262
  %v273 = vsel %vm267, %v247, %v264
  %v276 = vsel %vm267, %v255, %v266
  %v277 = vld [vmem:[%s1 + $0x8] sm:$0xf]
  %v278 = vld [vmem:[%s1 + $0xc] sm:$0xf]
  %v279 = vld [vmem:[%s1 + $0x10] sm:$0xf]
  %v280 = vld [vmem:[%s1 + $0x14] sm:$0xf]
  %v281 = vld [vmem:[%s1 + $0x18] sm:$0xf]
  %v282 = vld [vmem:[%s1 + $0x1c] sm:$0xf]
  %v283 = vld [vmem:[%s1 + $0x20] sm:$0xf]
  %v284 = vld [vmem:[%s1 + $0x24] sm:$0xf]
  %v285 = vld [vmem:[%s2 + $0x1] sm:$0x1]
  %v286 = vlaneseq
  %v287 = vshrl.u32 %v286, 7
  %v288 = vsub.s32 0, %v287
  %v289 = vrot.slane %v285, %v288
  %v298 = vunpack.c.l.b16 %v277
  %v299 = vunpack.c.l.b16 %v278
  %v300 = vunpack.c.l.b16 %v279
  %v301 = vunpack.c.l.b16 %v280
  %v302 = vunpack.c.l.b16 %v281
  %v303 = vunpack.c.l.b16 %v282
  %v304 = vunpack.c.l.b16 %v283
  %v305 = vunpack.c.l.b16 %v284
  %v306 = vpack.c.b16 %v299, %v298
  %v307 = vpack.c.b16 %v301, %v300
  %v308 = vpack.c.b16 %v303, %v302
  %v309 = vpack.c.b16 %v305, %v304
  %vm314 = vcmask 523264
  %v315 = vsel %vm314, %v270, 0
  %v317 = vsel %vm314, %v273, 0
  %v319 = vsel %vm314, %v276, 0
  %321 = vmatprep.subr.bf16.mxu0 0
  %322 = vmatpush1.bf16.msra.mxu0 %v306
  %323 = vmatprep.subr.bf16.mxu0 0
  %324 = vmatpush1.bf16.msra.mxu0 %v307
  %325 = vmatprep.subr.bf16.mxu0 0
  %326 = vmatpush1.bf16.msra.mxu0 %v308
  %327 = vmatprep.subr.bf16.mxu0 0
  %328 = vmatpush1.bf16.msra.mxu0 %v309
  %329 = vmatprep.subr.bf16.mxu0 0
  %330 = vmatpush1.bf16.msra.mxu0 0
  %331 = vmatprep.subr.bf16.mxu0 0
  %332 = vmatpush1.bf16.msra.mxu0 0
  %333 = vmatprep.subr.bf16.mxu0 0
  %334 = vmatpush1.bf16.msra.mxu0 0
  %335 = vmatprep.subr.bf16.mxu0 0
  %336 = vmatpush1.bf16.msra.mxu0 0
  %337 = vmatprep.subr.bf16.mxu0 0
  %338 = vmatpush1.bf16.msra.mxu0 0
  %339 = vmatprep.subr.bf16.mxu0 0
  %340 = vmatpush1.bf16.msra.mxu0 0
  %341 = vmatprep.subr.bf16.mxu0 0
  %342 = vmatpush1.bf16.msra.mxu0 0
  %343 = vmatprep.subr.bf16.mxu0 0
  %344 = vmatpush1.bf16.msra.mxu0 0
  %345 = vmatprep.subr.bf16.mxu0 0
  %346 = vmatpush1.bf16.msra.mxu0 0
  %347 = vmatprep.subr.bf16.mxu0 0
  %348 = vmatpush1.bf16.msra.mxu0 0
  %349 = vmatprep.subr.bf16.mxu0 0
  %350 = vmatpush1.bf16.msra.mxu0 0
  %351 = vmatprep.subr.bf16.mxu0 0
  %352 = vmatpush1.bf16.msra.mxu0 0
  %353 = vmatprep.mubr.bf16.mxu0 0
  %354 = vmatmul.mubr.bf16.gmra.mrb[0].mxu0 %v315
  %v355 = vpop.f32.mrb[0].mxu0
  %v356 = vadd.f32 %v289, %v355
  %v357 = vpop.f32.mrb[0].mxu0
  %v358 = vpop.f32.mrb[0].mxu0
  %v359 = vadd.f32 %v289, %v358
  %v360 = vpop.f32.mrb[0].mxu0
  %361 = vmatprep.mubr.bf16.mxu0 0
  %362 = vmatmul.mubr.bf16.gmra.mrb[0].mxu0 %v317
  %v363 = vpop.f32.mrb[0].mxu0
  %v364 = vadd.f32 %v289, %v363
  %v365 = vpop.f32.mrb[0].mxu0
  %v366 = vpop.f32.mrb[0].mxu0
  %v367 = vadd.f32 %v289, %v366
  %v368 = vpop.f32.mrb[0].mxu0
  %369 = vmatprep.mubr.bf16.mxu0 0
  %370 = vmatmul.mubr.bf16.gmra.mrb[0].mxu0 %v319
  %v371 = vpop.f32.mrb[0].mxu0
  %v372 = vadd.f32 %v289, %v371
  %v373 = vpop.f32.mrb[0].mxu0
  %v374 = vpop.f32.mrb[0].mxu0
  %v375 = vadd.f32 %v289, %v374
  %v376 = vpop.f32.mrb[0].mxu0
  %377 = vdwg.mxu0
  %v378 = vmax.f32 %v356, 0.0
  %v379 = vmax.f32 %v359, 0.0
  %v380 = vmax.f32 %v364, 0.0
  %v381 = vmax.f32 %v367, 0.0
  %v382 = vmax.f32 %v372, 0.0
  %v383 = vmax.f32 %v375, 0.0
  %v384 = vsel %vm218, %v378, 0.0
  %v385 = vsel %vm219, %v379, 0.0
  %v386 = vsel %vm220, %v380, 0.0
  %v387 = vsel %vm221, %v381, 0.0
  %v388 = vsel %vm222, %v382, 0.0
  %v389 = vsel %vm223, %v383, 0.0
  %v390 = vpack.c.bf16 %v385, %v384
  %v391 = vpack.c.bf16 %v387, %v386
  %v392 = vpack.c.bf16 %v389, %v388
  %v394 = vshrl.u32 %v390, 16
  %v396 = vrot.slane %v394, 7
  %v397 = vshll.u32 %v390, 16
  %v399 = vor.u32 %v396, %v397
  %v401 = vshrl.u32 %v391, 16
  %v403 = vrot.slane %v401, 7
  %v404 = vshll.u32 %v391, 16
  %v406 = vor.u32 %v403, %v404
  %v407 = vsel %vm85, %v396, %v406
  %v409 = vshrl.u32 %v392, 16
  %v411 = vrot.slane %v409, 7
  %v412 = vshll.u32 %v392, 16
  %v414 = vor.u32 %v411, %v412
  %v415 = vsel %vm85, %v403, %v414
  %v417 = vsel %vm111, 0, %v399
  %421 = vrot.lane.b32.xlu0 %v390, 32
  %v422 = vpop.permute.xlu0 %421
  %423 = vrot.lane.b32.xlu0 %v391, 32
  %v424 = vpop.permute.xlu0 %423
  %425 = vrot.lane.b32.xlu0 %v392, 32
  %v426 = vpop.permute.xlu0 %425
  %v429 = vsel %vm267, %v417, %v422
  %v432 = vsel %vm267, %v407, %v424
  %v435 = vsel %vm267, %v415, %v426
  %v436 = vld [vmem:[%s1 + $0x28] sm:$0xf]
  %v437 = vld [vmem:[%s1 + $0x2c] sm:$0xf]
  %v438 = vld [vmem:[%s1 + $0x30] sm:$0xf]
  %v439 = vld [vmem:[%s1 + $0x34] sm:$0xf]
  %v440 = vld [vmem:[%s1 + $0x38] sm:$0xf]
  %v441 = vld [vmem:[%s1 + $0x3c] sm:$0xf]
  %v442 = vld [vmem:[%s1 + $0x40] sm:$0xf]
  %v443 = vld [vmem:[%s1 + $0x44] sm:$0xf]
  %v444 = vld [vmem:[%s2 + $0x2] sm:$0x1]
  %v445 = vlaneseq
  %v446 = vshrl.u32 %v445, 7
  %v447 = vsub.s32 0, %v446
  %v448 = vrot.slane %v444, %v447
  %v457 = vunpack.c.l.b16 %v436
  %v458 = vunpack.c.l.b16 %v437
  %v459 = vunpack.c.l.b16 %v438
  %v460 = vunpack.c.l.b16 %v439
  %v461 = vunpack.c.l.b16 %v440
  %v462 = vunpack.c.l.b16 %v441
  %v463 = vunpack.c.l.b16 %v442
  %v464 = vunpack.c.l.b16 %v443
  %v465 = vpack.c.b16 %v458, %v457
  %v466 = vpack.c.b16 %v460, %v459
  %v467 = vpack.c.b16 %v462, %v461
  %v468 = vpack.c.b16 %v464, %v463
  %v473 = vsel %vm314, %v429, 0
  %v475 = vsel %vm314, %v432, 0
  %v477 = vsel %vm314, %v435, 0
  %479 = vmatprep.subr.bf16.mxu0 0
  %480 = vmatpush1.bf16.msra.mxu0 %v465
  %481 = vmatprep.subr.bf16.mxu0 0
  %482 = vmatpush1.bf16.msra.mxu0 %v466
  %483 = vmatprep.subr.bf16.mxu0 0
  %484 = vmatpush1.bf16.msra.mxu0 %v467
  %485 = vmatprep.subr.bf16.mxu0 0
  %486 = vmatpush1.bf16.msra.mxu0 %v468
  %487 = vmatprep.subr.bf16.mxu0 0
  %488 = vmatpush1.bf16.msra.mxu0 0
  %489 = vmatprep.subr.bf16.mxu0 0
  %490 = vmatpush1.bf16.msra.mxu0 0
  %491 = vmatprep.subr.bf16.mxu0 0
  %492 = vmatpush1.bf16.msra.mxu0 0
  %493 = vmatprep.subr.bf16.mxu0 0
  %494 = vmatpush1.bf16.msra.mxu0 0
  %495 = vmatprep.subr.bf16.mxu0 0
  %496 = vmatpush1.bf16.msra.mxu0 0
  %497 = vmatprep.subr.bf16.mxu0 0
  %498 = vmatpush1.bf16.msra.mxu0 0
  %499 = vmatprep.subr.bf16.mxu0 0
  %500 = vmatpush1.bf16.msra.mxu0 0
  %501 = vmatprep.subr.bf16.mxu0 0
  %502 = vmatpush1.bf16.msra.mxu0 0
  %503 = vmatprep.subr.bf16.mxu0 0
  %504 = vmatpush1.bf16.msra.mxu0 0
  %505 = vmatprep.subr.bf16.mxu0 0
  %506 = vmatpush1.bf16.msra.mxu0 0
  %507 = vmatprep.subr.bf16.mxu0 0
  %508 = vmatpush1.bf16.msra.mxu0 0
  %509 = vmatprep.subr.bf16.mxu0 0
  %510 = vmatpush1.bf16.msra.mxu0 0
  %511 = vmatprep.mubr.bf16.mxu0 0
  %512 = vmatmul.mubr.bf16.gmra.mrb[0].mxu0 %v473
  %v513 = vpop.f32.mrb[0].mxu0
  %v514 = vadd.f32 %v448, %v513
  %v515 = vpop.f32.mrb[0].mxu0
  %v516 = vpop.f32.mrb[0].mxu0
  %v517 = vadd.f32 %v448, %v516
  %v518 = vpop.f32.mrb[0].mxu0
  %519 = vmatprep.mubr.bf16.mxu0 0
  %520 = vmatmul.mubr.bf16.gmra.mrb[0].mxu0 %v475
  %v521 = vpop.f32.mrb[0].mxu0
  %v522 = vadd.f32 %v448, %v521
  %v523 = vpop.f32.mrb[0].mxu0
  %v524 = vpop.f32.mrb[0].mxu0
  %v525 = vadd.f32 %v448, %v524
  %v526 = vpop.f32.mrb[0].mxu0
  %527 = vmatprep.mubr.bf16.mxu0 0
  %528 = vmatmul.mubr.bf16.gmra.mrb[0].mxu0 %v477
  %v529 = vpop.f32.mrb[0].mxu0
  %v530 = vadd.f32 %v448, %v529
  %v531 = vpop.f32.mrb[0].mxu0
  %v532 = vpop.f32.mrb[0].mxu0
  %v533 = vadd.f32 %v448, %v532
  %v534 = vpop.f32.mrb[0].mxu0
  %535 = vdwg.mxu0
  %v536 = vmax.f32 %v514, 0.0
  %v537 = vmax.f32 %v517, 0.0
  %v538 = vmax.f32 %v522, 0.0
  %v539 = vmax.f32 %v525, 0.0
  %v540 = vmax.f32 %v530, 0.0
  %v541 = vmax.f32 %v533, 0.0
  %v542 = vsel %vm218, %v536, 0.0
  %v543 = vsel %vm219, %v537, 0.0
  %v544 = vsel %vm220, %v538, 0.0
  %v545 = vsel %vm221, %v539, 0.0
  %v546 = vsel %vm222, %v540, 0.0
  %v547 = vsel %vm223, %v541, 0.0
  %v548 = vpack.c.bf16 %v543, %v542
  %v549 = vpack.c.bf16 %v545, %v544
  %v550 = vpack.c.bf16 %v547, %v546
  %v552 = vshrl.u32 %v548, 16
  %v554 = vrot.slane %v552, 7
  %v555 = vshll.u32 %v548, 16
  %v557 = vor.u32 %v554, %v555
  %v559 = vshrl.u32 %v549, 16
  %v561 = vrot.slane %v559, 7
  %v562 = vshll.u32 %v549, 16
  %v564 = vor.u32 %v561, %v562
  %v565 = vsel %vm85, %v554, %v564
  %v567 = vshrl.u32 %v550, 16
  %v569 = vrot.slane %v567, 7
  %v570 = vshll.u32 %v550, 16
  %v572 = vor.u32 %v569, %v570
  %v573 = vsel %vm85, %v561, %v572
  %v575 = vsel %vm111, 0, %v557
  %579 = vrot.lane.b32.xlu0 %v548, 64
  %v580 = vpop.permute.xlu0 %579
  %581 = vrot.lane.b32.xlu0 %v549, 64
  %v582 = vpop.permute.xlu0 %581
  %583 = vrot.lane.b32.xlu0 %v550, 64
  %v584 = vpop.permute.xlu0 %583
  %v587 = vsel %vm314, %v575, %v580
  %v591 = vsel %vm314, %v565, %v582
  %v595 = vsel %vm314, %v573, %v584
  %v597 = vld [vmem:[%s1 + $0x48] sm:$0xf]
  %v598 = vld [vmem:[%s1 + $0x4c] sm:$0xf]
  %v599 = vld [vmem:[%s1 + $0x50] sm:$0xf]
  %v600 = vld [vmem:[%s1 + $0x54] sm:$0xf]
  %v601 = vld [vmem:[%s1 + $0x58] sm:$0xf]
  %v602 = vld [vmem:[%s1 + $0x5c] sm:$0xf]
  %v603 = vld [vmem:[%s1 + $0x60] sm:$0xf]
  %v604 = vld [vmem:[%s1 + $0x64] sm:$0xf]
  %v605 = vld [vmem:[%s1 + $0x68] sm:$0xf]
  %v606 = vld [vmem:[%s1 + $0x6c] sm:$0xf]
  %v607 = vld [vmem:[%s1 + $0x70] sm:$0xf]
  %v608 = vld [vmem:[%s1 + $0x74] sm:$0xf]
  %v609 = vld [vmem:[%s1 + $0x78] sm:$0xf]
  %v610 = vld [vmem:[%s1 + $0x7c] sm:$0xf]
  %v611 = vld [vmem:[%s1 + $0x80] sm:$0xf]
  %v612 = vld [vmem:[%s1 + $0x84] sm:$0xf]
  %v613 = vld [vmem:[%s2 + $0x3] sm:$0x1]
  %v614 = vlaneseq
  %v615 = vshrl.u32 %v614, 7
  %v616 = vsub.s32 0, %v615
  %v617 = vrot.slane %v613, %v616
  %v634 = vunpack.c.l.b16 %v597
  %v635 = vunpack.c.l.b16 %v598
  %v636 = vunpack.c.l.b16 %v599
  %v637 = vunpack.c.l.b16 %v600
  %v638 = vunpack.c.l.b16 %v601
  %v639 = vunpack.c.l.b16 %v602
  %v640 = vunpack.c.l.b16 %v603
  %v641 = vunpack.c.l.b16 %v604
  %v642 = vunpack.c.l.b16 %v605
  %v643 = vunpack.c.l.b16 %v606
  %v644 = vunpack.c.l.b16 %v607
  %v645 = vunpack.c.l.b16 %v608
  %v646 = vunpack.c.l.b16 %v609
  %v647 = vunpack.c.l.b16 %v610
  %v648 = vunpack.c.l.b16 %v611
  %v649 = vunpack.c.l.b16 %v612
  %v650 = vpack.c.b16 %v635, %v634
  %v651 = vpack.c.b16 %v637, %v636
  %v652 = vpack.c.b16 %v639, %v638
  %v653 = vpack.c.b16 %v641, %v640
  %v654 = vpack.c.b16 %v643, %v642
  %v655 = vpack.c.b16 %v645, %v644
  %v656 = vpack.c.b16 %v647, %v646
  %v657 = vpack.c.b16 %v649, %v648
  %666 = vmatprep.subr.bf16.mxu0 0
  %667 = vmatpush1.bf16.msra.mxu0 %v650
  %668 = vmatprep.subr.bf16.mxu0 0
  %669 = vmatpush1.bf16.msra.mxu0 %v651
  %670 = vmatprep.subr.bf16.mxu0 0
  %671 = vmatpush1.bf16.msra.mxu0 %v652
  %672 = vmatprep.subr.bf16.mxu0 0
  %673 = vmatpush1.bf16.msra.mxu0 %v653
  %674 = vmatprep.subr.bf16.mxu0 0
  %675 = vmatpush1.bf16.msra.mxu0 %v654
  %676 = vmatprep.subr.bf16.mxu0 0
  %677 = vmatpush1.bf16.msra.mxu0 %v655
  %678 = vmatprep.subr.bf16.mxu0 0
  %679 = vmatpush1.bf16.msra.mxu0 %v656
  %680 = vmatprep.subr.bf16.mxu0 0
  %681 = vmatpush1.bf16.msra.mxu0 %v657
  %682 = vmatprep.subr.bf16.mxu0 0
  %683 = vmatpush1.bf16.msra.mxu0 0
  %684 = vmatprep.subr.bf16.mxu0 0
  %685 = vmatpush1.bf16.msra.mxu0 0
  %686 = vmatprep.subr.bf16.mxu0 0
  %687 = vmatpush1.bf16.msra.mxu0 0
  %688 = vmatprep.subr.bf16.mxu0 0
  %689 = vmatpush1.bf16.msra.mxu0 0
  %690 = vmatprep.subr.bf16.mxu0 0
  %691 = vmatpush1.bf16.msra.mxu0 0
  %692 = vmatprep.subr.bf16.mxu0 0
  %693 = vmatpush1.bf16.msra.mxu0 0
  %694 = vmatprep.subr.bf16.mxu0 0
  %695 = vmatpush1.bf16.msra.mxu0 0
  %696 = vmatprep.subr.bf16.mxu0 0
  %697 = vmatpush1.bf16.msra.mxu0 0
  %698 = vmatprep.mubr.bf16.mxu0 0
  %699 = vmatmul.mubr.bf16.gmra.mrb[0].mxu0 %v587
  %v700 = vpop.f32.mrb[0].mxu0
  %v701 = vadd.f32 %v617, %v700
  %v702 = vpop.f32.mrb[0].mxu0
  %v703 = vpop.f32.mrb[0].mxu0
  %v704 = vadd.f32 %v617, %v703
  %v705 = vpop.f32.mrb[0].mxu0
  %706 = vmatprep.mubr.bf16.mxu0 0
  %707 = vmatmul.mubr.bf16.gmra.mrb[0].mxu0 %v591
  %v708 = vpop.f32.mrb[0].mxu0
  %v709 = vadd.f32 %v617, %v708
  %v710 = vpop.f32.mrb[0].mxu0
  %v711 = vpop.f32.mrb[0].mxu0
  %v712 = vadd.f32 %v617, %v711
  %v713 = vpop.f32.mrb[0].mxu0
  %714 = vmatprep.mubr.bf16.mxu0 0
  %715 = vmatmul.mubr.bf16.gmra.mrb[0].mxu0 %v595
  %v716 = vpop.f32.mrb[0].mxu0
  %v717 = vadd.f32 %v617, %v716
  %v718 = vpop.f32.mrb[0].mxu0
  %v719 = vpop.f32.mrb[0].mxu0
  %v720 = vadd.f32 %v617, %v719
  %v721 = vpop.f32.mrb[0].mxu0
  %722 = vdwg.mxu0
  %v723 = vsel %vm218, %v701, 0.0
  %v724 = vsel %vm219, %v704, 0.0
  %v725 = vsel %vm220, %v709, 0.0
  %v726 = vsel %vm221, %v712, 0.0
  %v727 = vsel %vm222, %v717, 0.0
  %v728 = vsel %vm223, %v720, 0.0
  %v729 = vpack.c.bf16 %v724, %v723
  %v730 = vpack.c.bf16 %v726, %v725
  %v731 = vpack.c.bf16 %v728, %v727
  %v733 = vshrl.u32 %v729, 16
  %v735 = vrot.slane %v733, 7
  %v736 = vshll.u32 %v729, 16
  %v738 = vor.u32 %v735, %v736
  %v740 = vshrl.u32 %v730, 16
  %v742 = vrot.slane %v740, 7
  %v743 = vshll.u32 %v730, 16
  %v745 = vor.u32 %v742, %v743
  %v746 = vsel %vm85, %v735, %v745
  %v748 = vshrl.u32 %v731, 16
  %v750 = vrot.slane %v748, 7
  %v751 = vshll.u32 %v731, 16
  %v753 = vor.u32 %v750, %v751
  %v754 = vsel %vm85, %v742, %v753
  %v756 = vsel %vm111, 0, %v738
  %760 = vrot.lane.b32.xlu0 %v729, 64
  %v761 = vpop.permute.xlu0 %760
  %762 = vrot.lane.b32.xlu0 %v730, 64
  %v763 = vpop.permute.xlu0 %762
  %764 = vrot.lane.b32.xlu0 %v731, 64
  %v765 = vpop.permute.xlu0 %764
  %v768 = vsel %vm314, %v756, %v761
  %v772 = vsel %vm314, %v746, %v763
  %v776 = vsel %vm314, %v754, %v765
  %v778 = vld [vmem:[%s1 + $0x88] sm:$0xf]
  %v779 = vld [vmem:[%s1 + $0x8c] sm:$0xf]
  %v780 = vld [vmem:[%s1 + $0x90] sm:$0xf]
  %v781 = vld [vmem:[%s1 + $0x94] sm:$0xf]
  %v782 = vld [vmem:[%s1 + $0x98] sm:$0xf]
  %v783 = vld [vmem:[%s1 + $0x9c] sm:$0xf]
  %v784 = vld [vmem:[%s1 + $0xa0] sm:$0xf]
  %v785 = vld [vmem:[%s1 + $0xa4] sm:$0xf]
  %v786 = vld [vmem:[%s1 + $0xa8] sm:$0xf]
  %v787 = vld [vmem:[%s1 + $0xac] sm:$0xf]
  %v788 = vld [vmem:[%s1 + $0xb0] sm:$0xf]
  %v789 = vld [vmem:[%s1 + $0xb4] sm:$0xf]
  %v790 = vld [vmem:[%s1 + $0xb8] sm:$0xf]
  %v791 = vld [vmem:[%s1 + $0xbc] sm:$0xf]
  %v792 = vld [vmem:[%s1 + $0xc0] sm:$0xf]
  %v793 = vld [vmem:[%s1 + $0xc4] sm:$0xf]
  %v794 = vld [vmem:[%s2 + $0x4] sm:$0x1]
  %v795 = vlaneseq
  %v796 = vshrl.u32 %v795, 7
  %v797 = vsub.s32 0, %v796
  %v798 = vrot.slane %v794, %v797
  %v815 = vunpack.c.l.b16 %v778
  %v816 = vunpack.c.l.b16 %v779
  %v817 = vunpack.c.l.b16 %v780
  %v818 = vunpack.c.l.b16 %v781
  %v819 = vunpack.c.l.b16 %v782
  %v820 = vunpack.c.l.b16 %v783
  %v821 = vunpack.c.l.b16 %v784
  %v822 = vunpack.c.l.b16 %v785
  %v823 = vunpack.c.l.b16 %v786
  %v824 = vunpack.c.l.b16 %v787
  %v825 = vunpack.c.l.b16 %v788
  %v826 = vunpack.c.l.b16 %v789
  %v827 = vunpack.c.l.b16 %v790
  %v828 = vunpack.c.l.b16 %v791
  %v829 = vunpack.c.l.b16 %v792
  %v830 = vunpack.c.l.b16 %v793
  %v831 = vpack.c.b16 %v816, %v815
  %v832 = vpack.c.b16 %v818, %v817
  %v833 = vpack.c.b16 %v820, %v819
  %v834 = vpack.c.b16 %v822, %v821
  %v835 = vpack.c.b16 %v824, %v823
  %v836 = vpack.c.b16 %v826, %v825
  %v837 = vpack.c.b16 %v828, %v827
  %v838 = vpack.c.b16 %v830, %v829
  %847 = vmatprep.subr.bf16.mxu0 0
  %848 = vmatpush1.bf16.msra.mxu0 %v831
  %849 = vmatprep.subr.bf16.mxu0 0
  %850 = vmatpush1.bf16.msra.mxu0 %v832
  %851 = vmatprep.subr.bf16.mxu0 0
  %852 = vmatpush1.bf16.msra.mxu0 %v833
  %853 = vmatprep.subr.bf16.mxu0 0
  %854 = vmatpush1.bf16.msra.mxu0 %v834
  %855 = vmatprep.subr.bf16.mxu0 0
  %856 = vmatpush1.bf16.msra.mxu0 %v835
  %857 = vmatprep.subr.bf16.mxu0 0
  %858 = vmatpush1.bf16.msra.mxu0 %v836
  %859 = vmatprep.subr.bf16.mxu0 0
  %860 = vmatpush1.bf16.msra.mxu0 %v837
  %861 = vmatprep.subr.bf16.mxu0 0
  %862 = vmatpush1.bf16.msra.mxu0 %v838
  %863 = vmatprep.subr.bf16.mxu0 0
  %864 = vmatpush1.bf16.msra.mxu0 0
  %865 = vmatprep.subr.bf16.mxu0 0
  %866 = vmatpush1.bf16.msra.mxu0 0
  %867 = vmatprep.subr.bf16.mxu0 0
  %868 = vmatpush1.bf16.msra.mxu0 0
  %869 = vmatprep.subr.bf16.mxu0 0
  %870 = vmatpush1.bf16.msra.mxu0 0
  %871 = vmatprep.subr.bf16.mxu0 0
  %872 = vmatpush1.bf16.msra.mxu0 0
  %873 = vmatprep.subr.bf16.mxu0 0
  %874 = vmatpush1.bf16.msra.mxu0 0
  %875 = vmatprep.subr.bf16.mxu0 0
  %876 = vmatpush1.bf16.msra.mxu0 0
  %877 = vmatprep.subr.bf16.mxu0 0
  %878 = vmatpush1.bf16.msra.mxu0 0
  %879 = vmatprep.mubr.bf16.mxu0 0
  %880 = vmatmul.mubr.bf16.gmra.mrb[0].mxu0 %v768
  %v881 = vpop.f32.mrb[0].mxu0
  %v882 = vadd.f32 %v798, %v881
  %v883 = vpop.f32.mrb[0].mxu0
  %v884 = vpop.f32.mrb[0].mxu0
  %v885 = vadd.f32 %v798, %v884
  %v886 = vpop.f32.mrb[0].mxu0
  %887 = vmatprep.mubr.bf16.mxu0 0
  %888 = vmatmul.mubr.bf16.gmra.mrb[0].mxu0 %v772
  %v889 = vpop.f32.mrb[0].mxu0
  %v890 = vadd.f32 %v798, %v889
  %v891 = vpop.f32.mrb[0].mxu0
  %v892 = vpop.f32.mrb[0].mxu0
  %v893 = vadd.f32 %v798, %v892
  %v894 = vpop.f32.mrb[0].mxu0
  %895 = vmatprep.mubr.bf16.mxu0 0
  %896 = vmatmul.mubr.bf16.gmra.mrb[0].mxu0 %v776
  %v897 = vpop.f32.mrb[0].mxu0
  %v898 = vadd.f32 %v798, %v897
  %v899 = vpop.f32.mrb[0].mxu0
  %v900 = vpop.f32.mrb[0].mxu0
  %v901 = vadd.f32 %v798, %v900
  %v902 = vpop.f32.mrb[0].mxu0
  %903 = vdwg.mxu0
  %v904 = vtanh.pop %v882
  %v905 = vtanh.pop %v885
  %v906 = vtanh.pop %v890
  %v907 = vtanh.pop %v893
  %v908 = vtanh.pop %v898
  %v909 = vtanh.pop %v901
  %v910 = vxor.u32 %v882, 2147483648
  %v911 = vxor.u32 %v885, 2147483648
  %v912 = vxor.u32 %v890, 2147483648
  %v913 = vxor.u32 %v893, 2147483648
  %v914 = vxor.u32 %v898, 2147483648
  %v915 = vxor.u32 %v901, 2147483648
  %v916 = vmul.f32 %v910, 1.442695
  %v917 = vpow.pop %v916
  %v918 = vmul.f32 %v911, 1.442695
  %v919 = vpow.pop %v918
  %v920 = vmul.f32 %v912, 1.442695
  %v921 = vpow.pop %v920
  %v922 = vmul.f32 %v913, 1.442695
  %v923 = vpow.pop %v922
  %v924 = vmul.f32 %v914, 1.442695
  %v925 = vpow.pop %v924
  %v926 = vmul.f32 %v915, 1.442695
  %v927 = vpow.pop %v926
  %v928 = vadd.f32 %v917, 1.0
  %v929 = vadd.f32 %v919, 1.0
  %v930 = vadd.f32 %v921, 1.0
  %v931 = vadd.f32 %v923, 1.0
  %v932 = vadd.f32 %v925, 1.0
  %v933 = vadd.f32 %v927, 1.0
  %v934 = vrcp.pop %v928
  %v935 = vmul.f32 1.0, %v934
  %v936 = vrcp.pop %v929
  %v937 = vmul.f32 1.0, %v936
  %v938 = vrcp.pop %v930
  %v939 = vmul.f32 1.0, %v938
  %v940 = vrcp.pop %v931
  %v941 = vmul.f32 1.0, %v940
  %v942 = vrcp.pop %v932
  %v943 = vmul.f32 1.0, %v942
  %v944 = vrcp.pop %v933
  %v945 = vmul.f32 1.0, %v944
  %v946 = vmul.f32 %v904, %v935
  %v947 = vmul.f32 %v905, %v937
  %v948 = vmul.f32 %v906, %v939
  %v949 = vmul.f32 %v907, %v941
  %v950 = vmul.f32 %v908, %v943
  %v951 = vmul.f32 %v909, %v945
  %v952 = vpack.c.bf16 %v947, %v946
  %v953 = vpack.c.bf16 %v949, %v948
  %v954 = vpack.c.bf16 %v951, %v950
  %v955 = vld [vmem:[%s1 + $0x1c8] sm:$0xf]
  %v956 = vld [vmem:[%s1 + $0x1cc] sm:$0xf]
  %v957 = vld [vmem:[%s1 + $0x1d0] sm:$0xf]
  %v958 = vld [vmem:[%s1 + $0x1d4] sm:$0xf]
  %v959 = vld [vmem:[%s1 + $0x1d8] sm:$0xf]
  %v960 = vld [vmem:[%s1 + $0x1dc] sm:$0xf]
  %v961 = vld [vmem:[%s1 + $0x1e0] sm:$0xf]
  %v962 = vld [vmem:[%s1 + $0x1e4] sm:$0xf]
  %v963 = vld [vmem:[%s2 + $0x9] sm:$0x1]
  %v964 = vlaneseq
  %v965 = vshrl.u32 %v964, 7
  %v966 = vsub.s32 0, %v965
  %v967 = vrot.slane %v963, %v966
  %v976 = vunpack.c.l.b16 %v955
  %v977 = vunpack.c.l.b16 %v956
  %v978 = vunpack.c.l.b16 %v957
  %v979 = vunpack.c.l.b16 %v958
  %v980 = vunpack.c.l.b16 %v959
  %v981 = vunpack.c.l.b16 %v960
  %v982 = vunpack.c.l.b16 %v961
  %v983 = vunpack.c.l.b16 %v962
  %v984 = vpack.c.b16 %v977, %v976
  %v985 = vpack.c.b16 %v979, %v978
  %v986 = vpack.c.b16 %v981, %v980
  %v987 = vpack.c.b16 %v983, %v982
  %v993 = vsel %vm314, %v952, 0
  %v996 = vsel %vm314, %v953, 0
  %v999 = vsel %vm314, %v954, 0
  %1001 = vmatprep.subr.bf16.mxu0 0
  %1002 = vmatpush1.bf16.msra.mxu0 %v984
  %1003 = vmatprep.subr.bf16.mxu0 0
  %1004 = vmatpush1.bf16.msra.mxu0 %v985
  %1005 = vmatprep.subr.bf16.mxu0 0
  %1006 = vmatpush1.bf16.msra.mxu0 %v986
  %1007 = vmatprep.subr.bf16.mxu0 0
  %1008 = vmatpush1.bf16.msra.mxu0 %v987
  %1009 = vmatprep.subr.bf16.mxu0 0
  %1010 = vmatpush1.bf16.msra.mxu0 0
  %1011 = vmatprep.subr.bf16.mxu0 0
  %1012 = vmatpush1.bf16.msra.mxu0 0
  %1013 = vmatprep.subr.bf16.mxu0 0
  %1014 = vmatpush1.bf16.msra.mxu0 0
  %1015 = vmatprep.subr.bf16.mxu0 0
  %1016 = vmatpush1.bf16.msra.mxu0 0
  %1017 = vmatprep.subr.bf16.mxu0 0
  %1018 = vmatpush1.bf16.msra.mxu0 0
  %1019 = vmatprep.subr.bf16.mxu0 0
  %1020 = vmatpush1.bf16.msra.mxu0 0
  %1021 = vmatprep.subr.bf16.mxu0 0
  %1022 = vmatpush1.bf16.msra.mxu0 0
  %1023 = vmatprep.subr.bf16.mxu0 0
  %1024 = vmatpush1.bf16.msra.mxu0 0
  %1025 = vmatprep.subr.bf16.mxu0 0
  %1026 = vmatpush1.bf16.msra.mxu0 0
  %1027 = vmatprep.subr.bf16.mxu0 0
  %1028 = vmatpush1.bf16.msra.mxu0 0
  %1029 = vmatprep.subr.bf16.mxu0 0
  %1030 = vmatpush1.bf16.msra.mxu0 0
  %1031 = vmatprep.subr.bf16.mxu0 0
  %1032 = vmatpush1.bf16.msra.mxu0 0
  %1033 = vmatprep.mubr.bf16.mxu0 0
  %1034 = vmatmul.mubr.bf16.gmra.mrb[0].mxu0 %v993
  %v1035 = vpop.f32.mrb[0].mxu0
  %v1036 = vadd.f32 %v967, %v1035
  %v1037 = vpop.f32.mrb[0].mxu0
  %v1038 = vpop.f32.mrb[0].mxu0
  %v1039 = vadd.f32 %v967, %v1038
  %v1040 = vpop.f32.mrb[0].mxu0
  %1041 = vmatprep.mubr.bf16.mxu0 0
  %1042 = vmatmul.mubr.bf16.gmra.mrb[0].mxu0 %v996
  %v1043 = vpop.f32.mrb[0].mxu0
  %v1044 = vadd.f32 %v967, %v1043
  %v1045 = vpop.f32.mrb[0].mxu0
  %v1046 = vpop.f32.mrb[0].mxu0
  %v1047 = vadd.f32 %v967, %v1046
  %v1048 = vpop.f32.mrb[0].mxu0
  %1049 = vmatprep.mubr.bf16.mxu0 0
  %1050 = vmatmul.mubr.bf16.gmra.mrb[0].mxu0 %v999
  %v1051 = vpop.f32.mrb[0].mxu0
  %v1052 = vadd.f32 %v967, %v1051
  %v1053 = vpop.f32.mrb[0].mxu0
  %v1054 = vpop.f32.mrb[0].mxu0
  %v1055 = vadd.f32 %v967, %v1054
  %v1056 = vpop.f32.mrb[0].mxu0
  %1057 = vdwg.mxu0
  %v1058 = vadd.f32 %v723, %v1036
  %v1059 = vadd.f32 %v724, %v1039
  %v1060 = vadd.f32 %v725, %v1044
  %v1061 = vadd.f32 %v726, %v1047
  %v1062 = vadd.f32 %v727, %v1052
  %v1063 = vadd.f32 %v728, %v1055
  %v1064 = vadd.f32 %v1036, 0.0
  %v1065 = vadd.f32 %v1039, 0.0
  %v1066 = vadd.f32 %v1044, 0.0
  %v1067 = vadd.f32 %v1047, 0.0
  %v1068 = vadd.f32 %v1052, 0.0
  %v1069 = vadd.f32 %v1055, 0.0
  %v1070 = vpack.c.bf16 %v1059, %v1058
  %v1071 = vpack.c.bf16 %v1061, %v1060
  %v1072 = vpack.c.bf16 %v1063, %v1062
  %v1074 = vshrl.u32 %v1070, 16
  %v1076 = vrot.slane %v1074, 7
  %v1077 = vshll.u32 %v1070, 16
  %v1079 = vor.u32 %v1076, %v1077
  %v1081 = vshrl.u32 %v1071, 16
  %v1083 = vrot.slane %v1081, 7
  %v1084 = vshll.u32 %v1071, 16
  %v1086 = vor.u32 %v1083, %v1084
  %v1087 = vsel %vm85, %v1076, %v1086
  %v1089 = vshrl.u32 %v1072, 16
  %v1091 = vrot.slane %v1089, 7
  %v1092 = vshll.u32 %v1072, 16
  %v1094 = vor.u32 %v1091, %v1092
  %v1095 = vsel %vm85, %v1083, %v1094
  %v1097 = vsel %vm111, 0, %v1079
  %1101 = vrot.lane.b32.xlu0 %v1070, 64
  %v1102 = vpop.permute.xlu0 %1101
  %1103 = vrot.lane.b32.xlu0 %v1071, 64
  %v1104 = vpop.permute.xlu0 %1103
  %1105 = vrot.lane.b32.xlu0 %v1072, 64
  %v1106 = vpop.permute.xlu0 %1105
  %v1109 = vsel %vm314, %v1097, %v1102
  %v1113 = vsel %vm314, %v1087, %v1104
  %v1117 = vsel %vm314, %v1095, %v1106
  %v1119 = vld [vmem:[%s1 + $0xc8] sm:$0xf]
  %v1120 = vld [vmem:[%s1 + $0xcc] sm:$0xf]
  %v1121 = vld [vmem:[%s1 + $0xd0] sm:$0xf]
  %v1122 = vld [vmem:[%s1 + $0xd4] sm:$0xf]
  %v1123 = vld [vmem:[%s1 + $0xd8] sm:$0xf]
  %v1124 = vld [vmem:[%s1 + $0xdc] sm:$0xf]
  %v1125 = vld [vmem:[%s1 + $0xe0] sm:$0xf]
  %v1126 = vld [vmem:[%s1 + $0xe4] sm:$0xf]
  %v1127 = vld [vmem:[%s1 + $0xe8] sm:$0xf]
  %v1128 = vld [vmem:[%s1 + $0xec] sm:$0xf]
  %v1129 = vld [vmem:[%s1 + $0xf0] sm:$0xf]
  %v1130 = vld [vmem:[%s1 + $0xf4] sm:$0xf]
  %v1131 = vld [vmem:[%s1 + $0xf8] sm:$0xf]
  %v1132 = vld [vmem:[%s1 + $0xfc] sm:$0xf]
  %v1133 = vld [vmem:[%s1 + $0x100] sm:$0xf]
  %v1134 = vld [vmem:[%s1 + $0x104] sm:$0xf]
  %v1135 = vld [vmem:[%s2 + $0x5] sm:$0x1]
  %v1136 = vlaneseq
  %v1137 = vshrl.u32 %v1136, 7
  %v1138 = vsub.s32 0, %v1137
  %v1139 = vrot.slane %v1135, %v1138
  %v1156 = vunpack.c.l.b16 %v1119
  %v1157 = vunpack.c.l.b16 %v1120
  %v1158 = vunpack.c.l.b16 %v1121
  %v1159 = vunpack.c.l.b16 %v1122
  %v1160 = vunpack.c.l.b16 %v1123
  %v1161 = vunpack.c.l.b16 %v1124
  %v1162 = vunpack.c.l.b16 %v1125
  %v1163 = vunpack.c.l.b16 %v1126
  %v1164 = vunpack.c.l.b16 %v1127
  %v1165 = vunpack.c.l.b16 %v1128
  %v1166 = vunpack.c.l.b16 %v1129
  %v1167 = vunpack.c.l.b16 %v1130
  %v1168 = vunpack.c.l.b16 %v1131
  %v1169 = vunpack.c.l.b16 %v1132
  %v1170 = vunpack.c.l.b16 %v1133
  %v1171 = vunpack.c.l.b16 %v1134
  %v1172 = vpack.c.b16 %v1157, %v1156
  %v1173 = vpack.c.b16 %v1159, %v1158
  %v1174 = vpack.c.b16 %v1161, %v1160
  %v1175 = vpack.c.b16 %v1163, %v1162
  %v1176 = vpack.c.b16 %v1165, %v1164
  %v1177 = vpack.c.b16 %v1167, %v1166
  %v1178 = vpack.c.b16 %v1169, %v1168
  %v1179 = vpack.c.b16 %v1171, %v1170
  %1188 = vmatprep.subr.bf16.mxu0 0
  %1189 = vmatpush1.bf16.msra.mxu0 %v1172
  %1190 = vmatprep.subr.bf16.mxu0 0
  %1191 = vmatpush1.bf16.msra.mxu0 %v1173
  %1192 = vmatprep.subr.bf16.mxu0 0
  %1193 = vmatpush1.bf16.msra.mxu0 %v1174
  %1194 = vmatprep.subr.bf16.mxu0 0
  %1195 = vmatpush1.bf16.msra.mxu0 %v1175
  %1196 = vmatprep.subr.bf16.mxu0 0
  %1197 = vmatpush1.bf16.msra.mxu0 %v1176
  %1198 = vmatprep.subr.bf16.mxu0 0
  %1199 = vmatpush1.bf16.msra.mxu0 %v1177
  %1200 = vmatprep.subr.bf16.mxu0 0
  %1201 = vmatpush1.bf16.msra.mxu0 %v1178
  %1202 = vmatprep.subr.bf16.mxu0 0
  %1203 = vmatpush1.bf16.msra.mxu0 %v1179
  %1204 = vmatprep.subr.bf16.mxu0 0
  %1205 = vmatpush1.bf16.msra.mxu0 0
  %1206 = vmatprep.subr.bf16.mxu0 0
  %1207 = vmatpush1.bf16.msra.mxu0 0
  %1208 = vmatprep.subr.bf16.mxu0 0
  %1209 = vmatpush1.bf16.msra.mxu0 0
  %1210 = vmatprep.subr.bf16.mxu0 0
  %1211 = vmatpush1.bf16.msra.mxu0 0
  %1212 = vmatprep.subr.bf16.mxu0 0
  %1213 = vmatpush1.bf16.msra.mxu0 0
  %1214 = vmatprep.subr.bf16.mxu0 0
  %1215 = vmatpush1.bf16.msra.mxu0 0
  %1216 = vmatprep.subr.bf16.mxu0 0
  %1217 = vmatpush1.bf16.msra.mxu0 0
  %1218 = vmatprep.subr.bf16.mxu0 0
  %1219 = vmatpush1.bf16.msra.mxu0 0
  %1220 = vmatprep.mubr.bf16.mxu0 0
  %1221 = vmatmul.mubr.bf16.gmra.mrb[0].mxu0 %v1109
  %v1222 = vpop.f32.mrb[0].mxu0
  %v1223 = vadd.f32 %v1139, %v1222
  %v1224 = vpop.f32.mrb[0].mxu0
  %v1225 = vpop.f32.mrb[0].mxu0
  %v1226 = vadd.f32 %v1139, %v1225
  %v1227 = vpop.f32.mrb[0].mxu0
  %1228 = vmatprep.mubr.bf16.mxu0 0
  %1229 = vmatmul.mubr.bf16.gmra.mrb[0].mxu0 %v1113
  %v1230 = vpop.f32.mrb[0].mxu0
  %v1231 = vadd.f32 %v1139, %v1230
  %v1232 = vpop.f32.mrb[0].mxu0
  %v1233 = vpop.f32.mrb[0].mxu0
  %v1234 = vadd.f32 %v1139, %v1233
  %v1235 = vpop.f32.mrb[0].mxu0
  %1236 = vmatprep.mubr.bf16.mxu0 0
  %1237 = vmatmul.mubr.bf16.gmra.mrb[0].mxu0 %v1117
  %v1238 = vpop.f32.mrb[0].mxu0
  %v1239 = vadd.f32 %v1139, %v1238
  %v1240 = vpop.f32.mrb[0].mxu0
  %v1241 = vpop.f32.mrb[0].mxu0
  %v1242 = vadd.f32 %v1139, %v1241
  %v1243 = vpop.f32.mrb[0].mxu0
  %1244 = vdwg.mxu0
  %v1245 = vtanh.pop %v1223
  %v1246 = vtanh.pop %v1226
  %v1247 = vtanh.pop %v1231
  %v1248 = vtanh.pop %v1234
  %v1249 = vtanh.pop %v1239
  %v1250 = vtanh.pop %v1242
  %v1251 = vxor.u32 %v1223, 2147483648
  %v1252 = vxor.u32 %v1226, 2147483648
  %v1253 = vxor.u32 %v1231, 2147483648
  %v1254 = vxor.u32 %v1234, 2147483648
  %v1255 = vxor.u32 %v1239, 2147483648
  %v1256 = vxor.u32 %v1242, 2147483648
  %v1257 = vmul.f32 %v1251, 1.442695
  %v1258 = vpow.pop %v1257
  %v1259 = vmul.f32 %v1252, 1.442695
  %v1260 = vpow.pop %v1259
  %v1261 = vmul.f32 %v1253, 1.442695
  %v1262 = vpow.pop %v1261
  %v1263 = vmul.f32 %v1254, 1.442695
  %v1264 = vpow.pop %v1263
  %v1265 = vmul.f32 %v1255, 1.442695
  %v1266 = vpow.pop %v1265
  %v1267 = vmul.f32 %v1256, 1.442695
  %v1268 = vpow.pop %v1267
  %v1269 = vadd.f32 %v1258, 1.0
  %v1270 = vadd.f32 %v1260, 1.0
  %v1271 = vadd.f32 %v1262, 1.0
  %v1272 = vadd.f32 %v1264, 1.0
  %v1273 = vadd.f32 %v1266, 1.0
  %v1274 = vadd.f32 %v1268, 1.0
  %v1275 = vrcp.pop %v1269
  %v1276 = vmul.f32 1.0, %v1275
  %v1277 = vrcp.pop %v1270
  %v1278 = vmul.f32 1.0, %v1277
  %v1279 = vrcp.pop %v1271
  %v1280 = vmul.f32 1.0, %v1279
  %v1281 = vrcp.pop %v1272
  %v1282 = vmul.f32 1.0, %v1281
  %v1283 = vrcp.pop %v1273
  %v1284 = vmul.f32 1.0, %v1283
  %v1285 = vrcp.pop %v1274
  %v1286 = vmul.f32 1.0, %v1285
  %v1287 = vmul.f32 %v1245, %v1276
  %v1288 = vmul.f32 %v1246, %v1278
  %v1289 = vmul.f32 %v1247, %v1280
  %v1290 = vmul.f32 %v1248, %v1282
  %v1291 = vmul.f32 %v1249, %v1284
  %v1292 = vmul.f32 %v1250, %v1286
  %v1293 = vpack.c.bf16 %v1288, %v1287
  %v1294 = vpack.c.bf16 %v1290, %v1289
  %v1295 = vpack.c.bf16 %v1292, %v1291
  %v1296 = vld [vmem:[%s1 + $0x1e8] sm:$0xf]
  %v1297 = vld [vmem:[%s1 + $0x1ec] sm:$0xf]
  %v1298 = vld [vmem:[%s1 + $0x1f0] sm:$0xf]
  %v1299 = vld [vmem:[%s1 + $0x1f4] sm:$0xf]
  %v1300 = vld [vmem:[%s1 + $0x1f8] sm:$0xf]
  %v1301 = vld [vmem:[%s1 + $0x1fc] sm:$0xf]
  %v1302 = vld [vmem:[%s1 + $0x200] sm:$0xf]
  %v1303 = vld [vmem:[%s1 + $0x204] sm:$0xf]
  %v1304 = vld [vmem:[%s2 + $0xa] sm:$0x1]
  %v1305 = vlaneseq
  %v1306 = vshrl.u32 %v1305, 7
  %v1307 = vsub.s32 0, %v1306
  %v1308 = vrot.slane %v1304, %v1307
  %v1317 = vunpack.c.l.b16 %v1296
  %v1318 = vunpack.c.l.b16 %v1297
  %v1319 = vunpack.c.l.b16 %v1298
  %v1320 = vunpack.c.l.b16 %v1299
  %v1321 = vunpack.c.l.b16 %v1300
  %v1322 = vunpack.c.l.b16 %v1301
  %v1323 = vunpack.c.l.b16 %v1302
  %v1324 = vunpack.c.l.b16 %v1303
  %v1325 = vpack.c.b16 %v1318, %v1317
  %v1326 = vpack.c.b16 %v1320, %v1319
  %v1327 = vpack.c.b16 %v1322, %v1321
  %v1328 = vpack.c.b16 %v1324, %v1323
  %v1334 = vsel %vm314, %v1293, 0
  %v1337 = vsel %vm314, %v1294, 0
  %v1340 = vsel %vm314, %v1295, 0
  %1342 = vmatprep.subr.bf16.mxu0 0
  %1343 = vmatpush1.bf16.msra.mxu0 %v1325
  %1344 = vmatprep.subr.bf16.mxu0 0
  %1345 = vmatpush1.bf16.msra.mxu0 %v1326
  %1346 = vmatprep.subr.bf16.mxu0 0
  %1347 = vmatpush1.bf16.msra.mxu0 %v1327
  %1348 = vmatprep.subr.bf16.mxu0 0
  %1349 = vmatpush1.bf16.msra.mxu0 %v1328
  %1350 = vmatprep.subr.bf16.mxu0 0
  %1351 = vmatpush1.bf16.msra.mxu0 0
  %1352 = vmatprep.subr.bf16.mxu0 0
  %1353 = vmatpush1.bf16.msra.mxu0 0
  %1354 = vmatprep.subr.bf16.mxu0 0
  %1355 = vmatpush1.bf16.msra.mxu0 0
  %1356 = vmatprep.subr.bf16.mxu0 0
  %1357 = vmatpush1.bf16.msra.mxu0 0
  %1358 = vmatprep.subr.bf16.mxu0 0
  %1359 = vmatpush1.bf16.msra.mxu0 0
  %1360 = vmatprep.subr.bf16.mxu0 0
  %1361 = vmatpush1.bf16.msra.mxu0 0
  %1362 = vmatprep.subr.bf16.mxu0 0
  %1363 = vmatpush1.bf16.msra.mxu0 0
  %1364 = vmatprep.subr.bf16.mxu0 0
  %1365 = vmatpush1.bf16.msra.mxu0 0
  %1366 = vmatprep.subr.bf16.mxu0 0
  %1367 = vmatpush1.bf16.msra.mxu0 0
  %1368 = vmatprep.subr.bf16.mxu0 0
  %1369 = vmatpush1.bf16.msra.mxu0 0
  %1370 = vmatprep.subr.bf16.mxu0 0
  %1371 = vmatpush1.bf16.msra.mxu0 0
  %1372 = vmatprep.subr.bf16.mxu0 0
  %1373 = vmatpush1.bf16.msra.mxu0 0
  %1374 = vmatprep.mubr.bf16.mxu0 0
  %1375 = vmatmul.mubr.bf16.gmra.mrb[0].mxu0 %v1334
  %v1376 = vpop.f32.mrb[0].mxu0
  %v1377 = vadd.f32 %v1308, %v1376
  %v1378 = vpop.f32.mrb[0].mxu0
  %v1379 = vpop.f32.mrb[0].mxu0
  %v1380 = vadd.f32 %v1308, %v1379
  %v1381 = vpop.f32.mrb[0].mxu0
  %1382 = vmatprep.mubr.bf16.mxu0 0
  %1383 = vmatmul.mubr.bf16.gmra.mrb[0].mxu0 %v1337
  %v1384 = vpop.f32.mrb[0].mxu0
  %v1385 = vadd.f32 %v1308, %v1384
  %v1386 = vpop.f32.mrb[0].mxu0
  %v1387 = vpop.f32.mrb[0].mxu0
  %v1388 = vadd.f32 %v1308, %v1387
  %v1389 = vpop.f32.mrb[0].mxu0
  %1390 = vmatprep.mubr.bf16.mxu0 0
  %1391 = vmatmul.mubr.bf16.gmra.mrb[0].mxu0 %v1340
  %v1392 = vpop.f32.mrb[0].mxu0
  %v1393 = vadd.f32 %v1308, %v1392
  %v1394 = vpop.f32.mrb[0].mxu0
  %v1395 = vpop.f32.mrb[0].mxu0
  %v1396 = vadd.f32 %v1308, %v1395
  %v1397 = vpop.f32.mrb[0].mxu0
  %1398 = vdwg.mxu0
  %v1399 = vadd.f32 %v1058, %v1377
  %v1400 = vadd.f32 %v1059, %v1380
  %v1401 = vadd.f32 %v1060, %v1385
  %v1402 = vadd.f32 %v1061, %v1388
  %v1403 = vadd.f32 %v1062, %v1393
  %v1404 = vadd.f32 %v1063, %v1396
  %v1405 = vadd.f32 %v1064, %v1377
  %v1406 = vadd.f32 %v1065, %v1380
  %v1407 = vadd.f32 %v1066, %v1385
  %v1408 = vadd.f32 %v1067, %v1388
  %v1409 = vadd.f32 %v1068, %v1393
  %v1410 = vadd.f32 %v1069, %v1396
  %v1411 = vpack.c.bf16 %v1400, %v1399
  %v1412 = vpack.c.bf16 %v1402, %v1401
  %v1413 = vpack.c.bf16 %v1404, %v1403
  %v1417 = vrot.slane %v1411, 7
  %v1418 = vrot.slane %v1412, 7
  %v1419 = vsel %vm110, %v1417, %v1418
  %v1420 = vrot.slane %v1413, 7
  %v1421 = vsel %vm110, %v1418, %v1420
  %vm1422 = vcmask 1040384
  %v1425 = vsel %vm1422, 0, %v1417
  %1426 = vrot.lane.b32.xlu0 %v1411, 64
  %v1427 = vpop.permute.xlu0 %1426
  %1428 = vrot.lane.b32.xlu0 %v1412, 64
  %v1429 = vpop.permute.xlu0 %1428
  %1430 = vrot.lane.b32.xlu0 %v1413, 64
  %v1431 = vpop.permute.xlu0 %1430
  %v1433 = vsel %vm314, %v1425, %v1427
  %v1437 = vsel %vm314, %v1419, %v1429
  %v1441 = vsel %vm314, %v1421, %v1431
  %v1443 = vld [vmem:[%s1 + $0x108] sm:$0xf]
  %v1444 = vld [vmem:[%s1 + $0x10c] sm:$0xf]
  %v1445 = vld [vmem:[%s1 + $0x110] sm:$0xf]
  %v1446 = vld [vmem:[%s1 + $0x114] sm:$0xf]
  %v1447 = vld [vmem:[%s1 + $0x118] sm:$0xf]
  %v1448 = vld [vmem:[%s1 + $0x11c] sm:$0xf]
  %v1449 = vld [vmem:[%s1 + $0x120] sm:$0xf]
  %v1450 = vld [vmem:[%s1 + $0x124] sm:$0xf]
  %v1451 = vld [vmem:[%s1 + $0x128] sm:$0xf]
  %v1452 = vld [vmem:[%s1 + $0x12c] sm:$0xf]
  %v1453 = vld [vmem:[%s1 + $0x130] sm:$0xf]
  %v1454 = vld [vmem:[%s1 + $0x134] sm:$0xf]
  %v1455 = vld [vmem:[%s1 + $0x138] sm:$0xf]
  %v1456 = vld [vmem:[%s1 + $0x13c] sm:$0xf]
  %v1457 = vld [vmem:[%s1 + $0x140] sm:$0xf]
  %v1458 = vld [vmem:[%s1 + $0x144] sm:$0xf]
  %v1459 = vld [vmem:[%s2 + $0x6] sm:$0x1]
  %v1460 = vlaneseq
  %v1461 = vshrl.u32 %v1460, 7
  %v1462 = vsub.s32 0, %v1461
  %v1463 = vrot.slane %v1459, %v1462
  %v1480 = vunpack.c.l.b16 %v1443
  %v1481 = vunpack.c.l.b16 %v1444
  %v1482 = vunpack.c.l.b16 %v1445
  %v1483 = vunpack.c.l.b16 %v1446
  %v1484 = vunpack.c.l.b16 %v1447
  %v1485 = vunpack.c.l.b16 %v1448
  %v1486 = vunpack.c.l.b16 %v1449
  %v1487 = vunpack.c.l.b16 %v1450
  %v1488 = vunpack.c.l.b16 %v1451
  %v1489 = vunpack.c.l.b16 %v1452
  %v1490 = vunpack.c.l.b16 %v1453
  %v1491 = vunpack.c.l.b16 %v1454
  %v1492 = vunpack.c.l.b16 %v1455
  %v1493 = vunpack.c.l.b16 %v1456
  %v1494 = vunpack.c.l.b16 %v1457
  %v1495 = vunpack.c.l.b16 %v1458
  %v1496 = vpack.c.b16 %v1481, %v1480
  %v1497 = vpack.c.b16 %v1483, %v1482
  %v1498 = vpack.c.b16 %v1485, %v1484
  %v1499 = vpack.c.b16 %v1487, %v1486
  %v1500 = vpack.c.b16 %v1489, %v1488
  %v1501 = vpack.c.b16 %v1491, %v1490
  %v1502 = vpack.c.b16 %v1493, %v1492
  %v1503 = vpack.c.b16 %v1495, %v1494
  %1512 = vmatprep.subr.bf16.mxu0 0
  %1513 = vmatpush1.bf16.msra.mxu0 %v1496
  %1514 = vmatprep.subr.bf16.mxu0 0
  %1515 = vmatpush1.bf16.msra.mxu0 %v1497
  %1516 = vmatprep.subr.bf16.mxu0 0
  %1517 = vmatpush1.bf16.msra.mxu0 %v1498
  %1518 = vmatprep.subr.bf16.mxu0 0
  %1519 = vmatpush1.bf16.msra.mxu0 %v1499
  %1520 = vmatprep.subr.bf16.mxu0 0
  %1521 = vmatpush1.bf16.msra.mxu0 %v1500
  %1522 = vmatprep.subr.bf16.mxu0 0
  %1523 = vmatpush1.bf16.msra.mxu0 %v1501
  %1524 = vmatprep.subr.bf16.mxu0 0
  %1525 = vmatpush1.bf16.msra.mxu0 %v1502
  %1526 = vmatprep.subr.bf16.mxu0 0
  %1527 = vmatpush1.bf16.msra.mxu0 %v1503
  %1528 = vmatprep.subr.bf16.mxu0 0
  %1529 = vmatpush1.bf16.msra.mxu0 0
  %1530 = vmatprep.subr.bf16.mxu0 0
  %1531 = vmatpush1.bf16.msra.mxu0 0
  %1532 = vmatprep.subr.bf16.mxu0 0
  %1533 = vmatpush1.bf16.msra.mxu0 0
  %1534 = vmatprep.subr.bf16.mxu0 0
  %1535 = vmatpush1.bf16.msra.mxu0 0
  %1536 = vmatprep.subr.bf16.mxu0 0
  %1537 = vmatpush1.bf16.msra.mxu0 0
  %1538 = vmatprep.subr.bf16.mxu0 0
  %1539 = vmatpush1.bf16.msra.mxu0 0
  %1540 = vmatprep.subr.bf16.mxu0 0
  %1541 = vmatpush1.bf16.msra.mxu0 0
  %1542 = vmatprep.subr.bf16.mxu0 0
  %1543 = vmatpush1.bf16.msra.mxu0 0
  %1544 = vmatprep.mubr.bf16.mxu0 0
  %1545 = vmatmul.mubr.bf16.gmra.mrb[0].mxu0 %v1433
  %v1546 = vpop.f32.mrb[0].mxu0
  %v1547 = vadd.f32 %v1463, %v1546
  %v1548 = vpop.f32.mrb[0].mxu0
  %v1549 = vpop.f32.mrb[0].mxu0
  %v1550 = vadd.f32 %v1463, %v1549
  %v1551 = vpop.f32.mrb[0].mxu0
  %1552 = vmatprep.mubr.bf16.mxu0 0
  %1553 = vmatmul.mubr.bf16.gmra.mrb[0].mxu0 %v1437
  %v1554 = vpop.f32.mrb[0].mxu0
  %v1555 = vadd.f32 %v1463, %v1554
  %v1556 = vpop.f32.mrb[0].mxu0
  %v1557 = vpop.f32.mrb[0].mxu0
  %v1558 = vadd.f32 %v1463, %v1557
  %v1559 = vpop.f32.mrb[0].mxu0
  %1560 = vmatprep.mubr.bf16.mxu0 0
  %1561 = vmatmul.mubr.bf16.gmra.mrb[0].mxu0 %v1441
  %v1562 = vpop.f32.mrb[0].mxu0
  %v1563 = vadd.f32 %v1463, %v1562
  %v1564 = vpop.f32.mrb[0].mxu0
  %v1565 = vpop.f32.mrb[0].mxu0
  %v1566 = vadd.f32 %v1463, %v1565
  %v1567 = vpop.f32.mrb[0].mxu0
  %1568 = vdwg.mxu0
  %v1569 = vtanh.pop %v1547
  %v1570 = vtanh.pop %v1550
  %v1571 = vtanh.pop %v1555
  %v1572 = vtanh.pop %v1558
  %v1573 = vtanh.pop %v1563
  %v1574 = vtanh.pop %v1566
  %v1575 = vxor.u32 %v1547, 2147483648
  %v1576 = vxor.u32 %v1550, 2147483648
  %v1577 = vxor.u32 %v1555, 2147483648
  %v1578 = vxor.u32 %v1558, 2147483648
  %v1579 = vxor.u32 %v1563, 2147483648
  %v1580 = vxor.u32 %v1566, 2147483648
  %v1581 = vmul.f32 %v1575, 1.442695
  %v1582 = vpow.pop %v1581
  %v1583 = vmul.f32 %v1576, 1.442695
  %v1584 = vpow.pop %v1583
  %v1585 = vmul.f32 %v1577, 1.442695
  %v1586 = vpow.pop %v1585
  %v1587 = vmul.f32 %v1578, 1.442695
  %v1588 = vpow.pop %v1587
  %v1589 = vmul.f32 %v1579, 1.442695
  %v1590 = vpow.pop %v1589
  %v1591 = vmul.f32 %v1580, 1.442695
  %v1592 = vpow.pop %v1591
  %v1593 = vadd.f32 %v1582, 1.0
  %v1594 = vadd.f32 %v1584, 1.0
  %v1595 = vadd.f32 %v1586, 1.0
  %v1596 = vadd.f32 %v1588, 1.0
  %v1597 = vadd.f32 %v1590, 1.0
  %v1598 = vadd.f32 %v1592, 1.0
  %v1599 = vrcp.pop %v1593
  %v1600 = vmul.f32 1.0, %v1599
  %v1601 = vrcp.pop %v1594
  %v1602 = vmul.f32 1.0, %v1601
  %v1603 = vrcp.pop %v1595
  %v1604 = vmul.f32 1.0, %v1603
  %v1605 = vrcp.pop %v1596
  %v1606 = vmul.f32 1.0, %v1605
  %v1607 = vrcp.pop %v1597
  %v1608 = vmul.f32 1.0, %v1607
  %v1609 = vrcp.pop %v1598
  %v1610 = vmul.f32 1.0, %v1609
  %v1611 = vmul.f32 %v1569, %v1600
  %v1612 = vmul.f32 %v1570, %v1602
  %v1613 = vmul.f32 %v1571, %v1604
  %v1614 = vmul.f32 %v1572, %v1606
  %v1615 = vmul.f32 %v1573, %v1608
  %v1616 = vmul.f32 %v1574, %v1610
  %v1617 = vpack.c.bf16 %v1612, %v1611
  %v1618 = vpack.c.bf16 %v1614, %v1613
  %v1619 = vpack.c.bf16 %v1616, %v1615
  %v1620 = vld [vmem:[%s1 + $0x208] sm:$0xf]
  %v1621 = vld [vmem:[%s1 + $0x20c] sm:$0xf]
  %v1622 = vld [vmem:[%s1 + $0x210] sm:$0xf]
  %v1623 = vld [vmem:[%s1 + $0x214] sm:$0xf]
  %v1624 = vld [vmem:[%s1 + $0x218] sm:$0xf]
  %v1625 = vld [vmem:[%s1 + $0x21c] sm:$0xf]
  %v1626 = vld [vmem:[%s1 + $0x220] sm:$0xf]
  %v1627 = vld [vmem:[%s1 + $0x224] sm:$0xf]
  %v1628 = vld [vmem:[%s2 + $0xb] sm:$0x1]
  %v1629 = vlaneseq
  %v1630 = vshrl.u32 %v1629, 7
  %v1631 = vsub.s32 0, %v1630
  %v1632 = vrot.slane %v1628, %v1631
  %v1641 = vunpack.c.l.b16 %v1620
  %v1642 = vunpack.c.l.b16 %v1621
  %v1643 = vunpack.c.l.b16 %v1622
  %v1644 = vunpack.c.l.b16 %v1623
  %v1645 = vunpack.c.l.b16 %v1624
  %v1646 = vunpack.c.l.b16 %v1625
  %v1647 = vunpack.c.l.b16 %v1626
  %v1648 = vunpack.c.l.b16 %v1627
  %v1649 = vpack.c.b16 %v1642, %v1641
  %v1650 = vpack.c.b16 %v1644, %v1643
  %v1651 = vpack.c.b16 %v1646, %v1645
  %v1652 = vpack.c.b16 %v1648, %v1647
  %v1658 = vsel %vm314, %v1617, 0
  %v1661 = vsel %vm314, %v1618, 0
  %v1664 = vsel %vm314, %v1619, 0
  %1666 = vmatprep.subr.bf16.mxu0 0
  %1667 = vmatpush1.bf16.msra.mxu0 %v1649
  %1668 = vmatprep.subr.bf16.mxu0 0
  %1669 = vmatpush1.bf16.msra.mxu0 %v1650
  %1670 = vmatprep.subr.bf16.mxu0 0
  %1671 = vmatpush1.bf16.msra.mxu0 %v1651
  %1672 = vmatprep.subr.bf16.mxu0 0
  %1673 = vmatpush1.bf16.msra.mxu0 %v1652
  %1674 = vmatprep.subr.bf16.mxu0 0
  %1675 = vmatpush1.bf16.msra.mxu0 0
  %1676 = vmatprep.subr.bf16.mxu0 0
  %1677 = vmatpush1.bf16.msra.mxu0 0
  %1678 = vmatprep.subr.bf16.mxu0 0
  %1679 = vmatpush1.bf16.msra.mxu0 0
  %1680 = vmatprep.subr.bf16.mxu0 0
  %1681 = vmatpush1.bf16.msra.mxu0 0
  %1682 = vmatprep.subr.bf16.mxu0 0
  %1683 = vmatpush1.bf16.msra.mxu0 0
  %1684 = vmatprep.subr.bf16.mxu0 0
  %1685 = vmatpush1.bf16.msra.mxu0 0
  %1686 = vmatprep.subr.bf16.mxu0 0
  %1687 = vmatpush1.bf16.msra.mxu0 0
  %1688 = vmatprep.subr.bf16.mxu0 0
  %1689 = vmatpush1.bf16.msra.mxu0 0
  %1690 = vmatprep.subr.bf16.mxu0 0
  %1691 = vmatpush1.bf16.msra.mxu0 0
  %1692 = vmatprep.subr.bf16.mxu0 0
  %1693 = vmatpush1.bf16.msra.mxu0 0
  %1694 = vmatprep.subr.bf16.mxu0 0
  %1695 = vmatpush1.bf16.msra.mxu0 0
  %1696 = vmatprep.subr.bf16.mxu0 0
  %1697 = vmatpush1.bf16.msra.mxu0 0
  %1698 = vmatprep.mubr.bf16.mxu0 0
  %1699 = vmatmul.mubr.bf16.gmra.mrb[0].mxu0 %v1658
  %v1700 = vpop.f32.mrb[0].mxu0
  %v1701 = vadd.f32 %v1632, %v1700
  %v1702 = vpop.f32.mrb[0].mxu0
  %v1703 = vpop.f32.mrb[0].mxu0
  %v1704 = vadd.f32 %v1632, %v1703
  %v1705 = vpop.f32.mrb[0].mxu0
  %1706 = vmatprep.mubr.bf16.mxu0 0
  %1707 = vmatmul.mubr.bf16.gmra.mrb[0].mxu0 %v1661
  %v1708 = vpop.f32.mrb[0].mxu0
  %v1709 = vadd.f32 %v1632, %v1708
  %v1710 = vpop.f32.mrb[0].mxu0
  %v1711 = vpop.f32.mrb[0].mxu0
  %v1712 = vadd.f32 %v1632, %v1711
  %v1713 = vpop.f32.mrb[0].mxu0
  %1714 = vmatprep.mubr.bf16.mxu0 0
  %1715 = vmatmul.mubr.bf16.gmra.mrb[0].mxu0 %v1664
  %v1716 = vpop.f32.mrb[0].mxu0
  %v1717 = vadd.f32 %v1632, %v1716
  %v1718 = vpop.f32.mrb[0].mxu0
  %v1719 = vpop.f32.mrb[0].mxu0
  %v1720 = vadd.f32 %v1632, %v1719
  %v1721 = vpop.f32.mrb[0].mxu0
  %1722 = vdwg.mxu0
  %v1723 = vadd.f32 %v1399, %v1701
  %v1724 = vadd.f32 %v1400, %v1704
  %v1725 = vadd.f32 %v1401, %v1709
  %v1726 = vadd.f32 %v1402, %v1712
  %v1727 = vadd.f32 %v1403, %v1717
  %v1728 = vadd.f32 %v1404, %v1720
  %v1729 = vadd.f32 %v1405, %v1701
  %v1730 = vadd.f32 %v1406, %v1704
  %v1731 = vadd.f32 %v1407, %v1709
  %v1732 = vadd.f32 %v1408, %v1712
  %v1733 = vadd.f32 %v1409, %v1717
  %v1734 = vadd.f32 %v1410, %v1720
  %v1735 = vpack.c.bf16 %v1724, %v1723
  %v1736 = vpack.c.bf16 %v1726, %v1725
  %v1737 = vpack.c.bf16 %v1728, %v1727
  %vm1741 = vcmask 1041408
  %v1742 = vrot.slane %v1735, 6
  %v1743 = vrot.slane %v1736, 6
  %v1744 = vsel %vm1741, %v1742, %v1743
  %v1745 = vrot.slane %v1737, 6
  %v1746 = vsel %vm1741, %v1743, %v1745
  %vm1747 = vcmask 1041408
  %v1749 = vsel %vm1747, 0, %v1742
  %1750 = vrot.lane.b32.xlu0 %v1735, 64
  %v1751 = vpop.permute.xlu0 %1750
  %1752 = vrot.lane.b32.xlu0 %v1736, 64
  %v1753 = vpop.permute.xlu0 %1752
  %1754 = vrot.lane.b32.xlu0 %v1737, 64
  %v1755 = vpop.permute.xlu0 %1754
  %v1757 = vsel %vm314, %v1749, %v1751
  %v1761 = vsel %vm314, %v1744, %v1753
  %v1765 = vsel %vm314, %v1746, %v1755
  %v1767 = vld [vmem:[%s1 + $0x148] sm:$0xf]
  %v1768 = vld [vmem:[%s1 + $0x14c] sm:$0xf]
  %v1769 = vld [vmem:[%s1 + $0x150] sm:$0xf]
  %v1770 = vld [vmem:[%s1 + $0x154] sm:$0xf]
  %v1771 = vld [vmem:[%s1 + $0x158] sm:$0xf]
  %v1772 = vld [vmem:[%s1 + $0x15c] sm:$0xf]
  %v1773 = vld [vmem:[%s1 + $0x160] sm:$0xf]
  %v1774 = vld [vmem:[%s1 + $0x164] sm:$0xf]
  %v1775 = vld [vmem:[%s1 + $0x168] sm:$0xf]
  %v1776 = vld [vmem:[%s1 + $0x16c] sm:$0xf]
  %v1777 = vld [vmem:[%s1 + $0x170] sm:$0xf]
  %v1778 = vld [vmem:[%s1 + $0x174] sm:$0xf]
  %v1779 = vld [vmem:[%s1 + $0x178] sm:$0xf]
  %v1780 = vld [vmem:[%s1 + $0x17c] sm:$0xf]
  %v1781 = vld [vmem:[%s1 + $0x180] sm:$0xf]
  %v1782 = vld [vmem:[%s1 + $0x184] sm:$0xf]
  %v1783 = vld [vmem:[%s2 + $0x7] sm:$0x1]
  %v1784 = vlaneseq
  %v1785 = vshrl.u32 %v1784, 7
  %v1786 = vsub.s32 0, %v1785
  %v1787 = vrot.slane %v1783, %v1786
  %v1804 = vunpack.c.l.b16 %v1767
  %v1805 = vunpack.c.l.b16 %v1768
  %v1806 = vunpack.c.l.b16 %v1769
  %v1807 = vunpack.c.l.b16 %v1770
  %v1808 = vunpack.c.l.b16 %v1771
  %v1809 = vunpack.c.l.b16 %v1772
  %v1810 = vunpack.c.l.b16 %v1773
  %v1811 = vunpack.c.l.b16 %v1774
  %v1812 = vunpack.c.l.b16 %v1775
  %v1813 = vunpack.c.l.b16 %v1776
  %v1814 = vunpack.c.l.b16 %v1777
  %v1815 = vunpack.c.l.b16 %v1778
  %v1816 = vunpack.c.l.b16 %v1779
  %v1817 = vunpack.c.l.b16 %v1780
  %v1818 = vunpack.c.l.b16 %v1781
  %v1819 = vunpack.c.l.b16 %v1782
  %v1820 = vpack.c.b16 %v1805, %v1804
  %v1821 = vpack.c.b16 %v1807, %v1806
  %v1822 = vpack.c.b16 %v1809, %v1808
  %v1823 = vpack.c.b16 %v1811, %v1810
  %v1824 = vpack.c.b16 %v1813, %v1812
  %v1825 = vpack.c.b16 %v1815, %v1814
  %v1826 = vpack.c.b16 %v1817, %v1816
  %v1827 = vpack.c.b16 %v1819, %v1818
  %1836 = vmatprep.subr.bf16.mxu0 0
  %1837 = vmatpush1.bf16.msra.mxu0 %v1820
  %1838 = vmatprep.subr.bf16.mxu0 0
  %1839 = vmatpush1.bf16.msra.mxu0 %v1821
  %1840 = vmatprep.subr.bf16.mxu0 0
  %1841 = vmatpush1.bf16.msra.mxu0 %v1822
  %1842 = vmatprep.subr.bf16.mxu0 0
  %1843 = vmatpush1.bf16.msra.mxu0 %v1823
  %1844 = vmatprep.subr.bf16.mxu0 0
  %1845 = vmatpush1.bf16.msra.mxu0 %v1824
  %1846 = vmatprep.subr.bf16.mxu0 0
  %1847 = vmatpush1.bf16.msra.mxu0 %v1825
  %1848 = vmatprep.subr.bf16.mxu0 0
  %1849 = vmatpush1.bf16.msra.mxu0 %v1826
  %1850 = vmatprep.subr.bf16.mxu0 0
  %1851 = vmatpush1.bf16.msra.mxu0 %v1827
  %1852 = vmatprep.subr.bf16.mxu0 0
  %1853 = vmatpush1.bf16.msra.mxu0 0
  %1854 = vmatprep.subr.bf16.mxu0 0
  %1855 = vmatpush1.bf16.msra.mxu0 0
  %1856 = vmatprep.subr.bf16.mxu0 0
  %1857 = vmatpush1.bf16.msra.mxu0 0
  %1858 = vmatprep.subr.bf16.mxu0 0
  %1859 = vmatpush1.bf16.msra.mxu0 0
  %1860 = vmatprep.subr.bf16.mxu0 0
  %1861 = vmatpush1.bf16.msra.mxu0 0
  %1862 = vmatprep.subr.bf16.mxu0 0
  %1863 = vmatpush1.bf16.msra.mxu0 0
  %1864 = vmatprep.subr.bf16.mxu0 0
  %1865 = vmatpush1.bf16.msra.mxu0 0
  %1866 = vmatprep.subr.bf16.mxu0 0
  %1867 = vmatpush1.bf16.msra.mxu0 0
  %1868 = vmatprep.mubr.bf16.mxu0 0
  %1869 = vmatmul.mubr.bf16.gmra.mrb[0].mxu0 %v1757
  %v1870 = vpop.f32.mrb[0].mxu0
  %v1871 = vadd.f32 %v1787, %v1870
  %v1872 = vpop.f32.mrb[0].mxu0
  %v1873 = vpop.f32.mrb[0].mxu0
  %v1874 = vadd.f32 %v1787, %v1873
  %v1875 = vpop.f32.mrb[0].mxu0
  %1876 = vmatprep.mubr.bf16.mxu0 0
  %1877 = vmatmul.mubr.bf16.gmra.mrb[0].mxu0 %v1761
  %v1878 = vpop.f32.mrb[0].mxu0
  %v1879 = vadd.f32 %v1787, %v1878
  %v1880 = vpop.f32.mrb[0].mxu0
  %v1881 = vpop.f32.mrb[0].mxu0
  %v1882 = vadd.f32 %v1787, %v1881
  %v1883 = vpop.f32.mrb[0].mxu0
  %1884 = vmatprep.mubr.bf16.mxu0 0
  %1885 = vmatmul.mubr.bf16.gmra.mrb[0].mxu0 %v1765
  %v1886 = vpop.f32.mrb[0].mxu0
  %v1887 = vadd.f32 %v1787, %v1886
  %v1888 = vpop.f32.mrb[0].mxu0
  %v1889 = vpop.f32.mrb[0].mxu0
  %v1890 = vadd.f32 %v1787, %v1889
  %v1891 = vpop.f32.mrb[0].mxu0
  %1892 = vdwg.mxu0
  %v1893 = vtanh.pop %v1871
  %v1894 = vtanh.pop %v1874
  %v1895 = vtanh.pop %v1879
  %v1896 = vtanh.pop %v1882
  %v1897 = vtanh.pop %v1887
  %v1898 = vtanh.pop %v1890
  %v1899 = vxor.u32 %v1871, 2147483648
  %v1900 = vxor.u32 %v1874, 2147483648
  %v1901 = vxor.u32 %v1879, 2147483648
  %v1902 = vxor.u32 %v1882, 2147483648
  %v1903 = vxor.u32 %v1887, 2147483648
  %v1904 = vxor.u32 %v1890, 2147483648
  %v1905 = vmul.f32 %v1899, 1.442695
  %v1906 = vpow.pop %v1905
  %v1907 = vmul.f32 %v1900, 1.442695
  %v1908 = vpow.pop %v1907
  %v1909 = vmul.f32 %v1901, 1.442695
  %v1910 = vpow.pop %v1909
  %v1911 = vmul.f32 %v1902, 1.442695
  %v1912 = vpow.pop %v1911
  %v1913 = vmul.f32 %v1903, 1.442695
  %v1914 = vpow.pop %v1913
  %v1915 = vmul.f32 %v1904, 1.442695
  %v1916 = vpow.pop %v1915
  %v1917 = vadd.f32 %v1906, 1.0
  %v1918 = vadd.f32 %v1908, 1.0
  %v1919 = vadd.f32 %v1910, 1.0
  %v1920 = vadd.f32 %v1912, 1.0
  %v1921 = vadd.f32 %v1914, 1.0
  %v1922 = vadd.f32 %v1916, 1.0
  %v1923 = vrcp.pop %v1917
  %v1924 = vmul.f32 1.0, %v1923
  %v1925 = vrcp.pop %v1918
  %v1926 = vmul.f32 1.0, %v1925
  %v1927 = vrcp.pop %v1919
  %v1928 = vmul.f32 1.0, %v1927
  %v1929 = vrcp.pop %v1920
  %v1930 = vmul.f32 1.0, %v1929
  %v1931 = vrcp.pop %v1921
  %v1932 = vmul.f32 1.0, %v1931
  %v1933 = vrcp.pop %v1922
  %v1934 = vmul.f32 1.0, %v1933
  %v1935 = vmul.f32 %v1893, %v1924
  %v1936 = vmul.f32 %v1894, %v1926
  %v1937 = vmul.f32 %v1895, %v1928
  %v1938 = vmul.f32 %v1896, %v1930
  %v1939 = vmul.f32 %v1897, %v1932
  %v1940 = vmul.f32 %v1898, %v1934
  %v1941 = vpack.c.bf16 %v1936, %v1935
  %v1942 = vpack.c.bf16 %v1938, %v1937
  %v1943 = vpack.c.bf16 %v1940, %v1939
  %v1944 = vld [vmem:[%s1 + $0x228] sm:$0xf]
  %v1945 = vld [vmem:[%s1 + $0x22c] sm:$0xf]
  %v1946 = vld [vmem:[%s1 + $0x230] sm:$0xf]
  %v1947 = vld [vmem:[%s1 + $0x234] sm:$0xf]
  %v1948 = vld [vmem:[%s1 + $0x238] sm:$0xf]
  %v1949 = vld [vmem:[%s1 + $0x23c] sm:$0xf]
  %v1950 = vld [vmem:[%s1 + $0x240] sm:$0xf]
  %v1951 = vld [vmem:[%s1 + $0x244] sm:$0xf]
  %v1952 = vld [vmem:[%s2 + $0xc] sm:$0x1]
  %v1953 = vlaneseq
  %v1954 = vshrl.u32 %v1953, 7
  %v1955 = vsub.s32 0, %v1954
  %v1956 = vrot.slane %v1952, %v1955
  %v1965 = vunpack.c.l.b16 %v1944
  %v1966 = vunpack.c.l.b16 %v1945
  %v1967 = vunpack.c.l.b16 %v1946
  %v1968 = vunpack.c.l.b16 %v1947
  %v1969 = vunpack.c.l.b16 %v1948
  %v1970 = vunpack.c.l.b16 %v1949
  %v1971 = vunpack.c.l.b16 %v1950
  %v1972 = vunpack.c.l.b16 %v1951
  %v1973 = vpack.c.b16 %v1966, %v1965
  %v1974 = vpack.c.b16 %v1968, %v1967
  %v1975 = vpack.c.b16 %v1970, %v1969
  %v1976 = vpack.c.b16 %v1972, %v1971
  %v1982 = vsel %vm314, %v1941, 0
  %v1985 = vsel %vm314, %v1942, 0
  %v1988 = vsel %vm314, %v1943, 0
  %1990 = vmatprep.subr.bf16.mxu0 0
  %1991 = vmatpush1.bf16.msra.mxu0 %v1973
  %1992 = vmatprep.subr.bf16.mxu0 0
  %1993 = vmatpush1.bf16.msra.mxu0 %v1974
  %1994 = vmatprep.subr.bf16.mxu0 0
  %1995 = vmatpush1.bf16.msra.mxu0 %v1975
  %1996 = vmatprep.subr.bf16.mxu0 0
  %1997 = vmatpush1.bf16.msra.mxu0 %v1976
  %1998 = vmatprep.subr.bf16.mxu0 0
  %1999 = vmatpush1.bf16.msra.mxu0 0
  %2000 = vmatprep.subr.bf16.mxu0 0
  %2001 = vmatpush1.bf16.msra.mxu0 0
  %2002 = vmatprep.subr.bf16.mxu0 0
  %2003 = vmatpush1.bf16.msra.mxu0 0
  %2004 = vmatprep.subr.bf16.mxu0 0
  %2005 = vmatpush1.bf16.msra.mxu0 0
  %2006 = vmatprep.subr.bf16.mxu0 0
  %2007 = vmatpush1.bf16.msra.mxu0 0
  %2008 = vmatprep.subr.bf16.mxu0 0
  %2009 = vmatpush1.bf16.msra.mxu0 0
  %2010 = vmatprep.subr.bf16.mxu0 0
  %2011 = vmatpush1.bf16.msra.mxu0 0
  %2012 = vmatprep.subr.bf16.mxu0 0
  %2013 = vmatpush1.bf16.msra.mxu0 0
  %2014 = vmatprep.subr.bf16.mxu0 0
  %2015 = vmatpush1.bf16.msra.mxu0 0
  %2016 = vmatprep.subr.bf16.mxu0 0
  %2017 = vmatpush1.bf16.msra.mxu0 0
  %2018 = vmatprep.subr.bf16.mxu0 0
  %2019 = vmatpush1.bf16.msra.mxu0 0
  %2020 = vmatprep.subr.bf16.mxu0 0
  %2021 = vmatpush1.bf16.msra.mxu0 0
  %2022 = vmatprep.mubr.bf16.mxu0 0
  %2023 = vmatmul.mubr.bf16.gmra.mrb[0].mxu0 %v1982
  %v2024 = vpop.f32.mrb[0].mxu0
  %v2025 = vadd.f32 %v1956, %v2024
  %v2026 = vpop.f32.mrb[0].mxu0
  %v2027 = vpop.f32.mrb[0].mxu0
  %v2028 = vadd.f32 %v1956, %v2027
  %v2029 = vpop.f32.mrb[0].mxu0
  %2030 = vmatprep.mubr.bf16.mxu0 0
  %2031 = vmatmul.mubr.bf16.gmra.mrb[0].mxu0 %v1985
  %v2032 = vpop.f32.mrb[0].mxu0
  %v2033 = vadd.f32 %v1956, %v2032
  %v2034 = vpop.f32.mrb[0].mxu0
  %v2035 = vpop.f32.mrb[0].mxu0
  %v2036 = vadd.f32 %v1956, %v2035
  %v2037 = vpop.f32.mrb[0].mxu0
  %2038 = vmatprep.mubr.bf16.mxu0 0
  %2039 = vmatmul.mubr.bf16.gmra.mrb[0].mxu0 %v1988
  %v2040 = vpop.f32.mrb[0].mxu0
  %v2041 = vadd.f32 %v1956, %v2040
  %v2042 = vpop.f32.mrb[0].mxu0
  %v2043 = vpop.f32.mrb[0].mxu0
  %v2044 = vadd.f32 %v1956, %v2043
  %v2045 = vpop.f32.mrb[0].mxu0
  %2046 = vdwg.mxu0
  %v2047 = vadd.f32 %v1723, %v2025
  %v2048 = vadd.f32 %v1724, %v2028
  %v2049 = vadd.f32 %v1725, %v2033
  %v2050 = vadd.f32 %v1726, %v2036
  %v2051 = vadd.f32 %v1727, %v2041
  %v2052 = vadd.f32 %v1728, %v2044
  %v2053 = vadd.f32 %v1729, %v2025
  %v2054 = vadd.f32 %v1730, %v2028
  %v2055 = vadd.f32 %v1731, %v2033
  %v2056 = vadd.f32 %v1732, %v2036
  %v2057 = vadd.f32 %v1733, %v2041
  %v2058 = vadd.f32 %v1734, %v2044
  %v2059 = vpack.c.bf16 %v2048, %v2047
  %v2060 = vpack.c.bf16 %v2050, %v2049
  %v2061 = vpack.c.bf16 %v2052, %v2051
  %vm2065 = vcmask 1043456
  %v2066 = vrot.slane %v2059, 4
  %v2067 = vrot.slane %v2060, 4
  %v2068 = vsel %vm2065, %v2066, %v2067
  %v2069 = vrot.slane %v2061, 4
  %v2070 = vsel %vm2065, %v2067, %v2069
  %v2072 = vsel %vm145, 0, %v2066
  %2073 = vrot.lane.b32.xlu0 %v2059, 64
  %v2074 = vpop.permute.xlu0 %2073
  %2075 = vrot.lane.b32.xlu0 %v2060, 64
  %v2076 = vpop.permute.xlu0 %2075
  %2077 = vrot.lane.b32.xlu0 %v2061, 64
  %v2078 = vpop.permute.xlu0 %2077
  %v2080 = vsel %vm314, %v2072, %v2074
  %v2084 = vsel %vm314, %v2068, %v2076
  %v2088 = vsel %vm314, %v2070, %v2078
  %v2090 = vld [vmem:[%s1 + $0x188] sm:$0xf]
  %v2091 = vld [vmem:[%s1 + $0x18c] sm:$0xf]
  %v2092 = vld [vmem:[%s1 + $0x190] sm:$0xf]
  %v2093 = vld [vmem:[%s1 + $0x194] sm:$0xf]
  %v2094 = vld [vmem:[%s1 + $0x198] sm:$0xf]
  %v2095 = vld [vmem:[%s1 + $0x19c] sm:$0xf]
  %v2096 = vld [vmem:[%s1 + $0x1a0] sm:$0xf]
  %v2097 = vld [vmem:[%s1 + $0x1a4] sm:$0xf]
  %v2098 = vld [vmem:[%s1 + $0x1a8] sm:$0xf]
  %v2099 = vld [vmem:[%s1 + $0x1ac] sm:$0xf]
  %v2100 = vld [vmem:[%s1 + $0x1b0] sm:$0xf]
  %v2101 = vld [vmem:[%s1 + $0x1b4] sm:$0xf]
  %v2102 = vld [vmem:[%s1 + $0x1b8] sm:$0xf]
  %v2103 = vld [vmem:[%s1 + $0x1bc] sm:$0xf]
  %v2104 = vld [vmem:[%s1 + $0x1c0] sm:$0xf]
  %v2105 = vld [vmem:[%s1 + $0x1c4] sm:$0xf]
  %v2106 = vld [vmem:[%s2 + $0x8] sm:$0x1]
  %v2107 = vlaneseq
  %v2108 = vshrl.u32 %v2107, 7
  %v2109 = vsub.s32 0, %v2108
  %v2110 = vrot.slane %v2106, %v2109
  %v2127 = vunpack.c.l.b16 %v2090
  %v2128 = vunpack.c.l.b16 %v2091
  %v2129 = vunpack.c.l.b16 %v2092
  %v2130 = vunpack.c.l.b16 %v2093
  %v2131 = vunpack.c.l.b16 %v2094
  %v2132 = vunpack.c.l.b16 %v2095
  %v2133 = vunpack.c.l.b16 %v2096
  %v2134 = vunpack.c.l.b16 %v2097
  %v2135 = vunpack.c.l.b16 %v2098
  %v2136 = vunpack.c.l.b16 %v2099
  %v2137 = vunpack.c.l.b16 %v2100
  %v2138 = vunpack.c.l.b16 %v2101
  %v2139 = vunpack.c.l.b16 %v2102
  %v2140 = vunpack.c.l.b16 %v2103
  %v2141 = vunpack.c.l.b16 %v2104
  %v2142 = vunpack.c.l.b16 %v2105
  %v2143 = vpack.c.b16 %v2128, %v2127
  %v2144 = vpack.c.b16 %v2130, %v2129
  %v2145 = vpack.c.b16 %v2132, %v2131
  %v2146 = vpack.c.b16 %v2134, %v2133
  %v2147 = vpack.c.b16 %v2136, %v2135
  %v2148 = vpack.c.b16 %v2138, %v2137
  %v2149 = vpack.c.b16 %v2140, %v2139
  %v2150 = vpack.c.b16 %v2142, %v2141
  %2159 = vmatprep.subr.bf16.mxu0 0
  %2160 = vmatpush1.bf16.msra.mxu0 %v2143
  %2161 = vmatprep.subr.bf16.mxu0 0
  %2162 = vmatpush1.bf16.msra.mxu0 %v2144
  %2163 = vmatprep.subr.bf16.mxu0 0
  %2164 = vmatpush1.bf16.msra.mxu0 %v2145
  %2165 = vmatprep.subr.bf16.mxu0 0
  %2166 = vmatpush1.bf16.msra.mxu0 %v2146
  %2167 = vmatprep.subr.bf16.mxu0 0
  %2168 = vmatpush1.bf16.msra.mxu0 %v2147
  %2169 = vmatprep.subr.bf16.mxu0 0
  %2170 = vmatpush1.bf16.msra.mxu0 %v2148
  %2171 = vmatprep.subr.bf16.mxu0 0
  %2172 = vmatpush1.bf16.msra.mxu0 %v2149
  %2173 = vmatprep.subr.bf16.mxu0 0
  %2174 = vmatpush1.bf16.msra.mxu0 %v2150
  %2175 = vmatprep.subr.bf16.mxu0 0
  %2176 = vmatpush1.bf16.msra.mxu0 0
  %2177 = vmatprep.subr.bf16.mxu0 0
  %2178 = vmatpush1.bf16.msra.mxu0 0
  %2179 = vmatprep.subr.bf16.mxu0 0
  %2180 = vmatpush1.bf16.msra.mxu0 0
  %2181 = vmatprep.subr.bf16.mxu0 0
  %2182 = vmatpush1.bf16.msra.mxu0 0
  %2183 = vmatprep.subr.bf16.mxu0 0
  %2184 = vmatpush1.bf16.msra.mxu0 0
  %2185 = vmatprep.subr.bf16.mxu0 0
  %2186 = vmatpush1.bf16.msra.mxu0 0
  %2187 = vmatprep.subr.bf16.mxu0 0
  %2188 = vmatpush1.bf16.msra.mxu0 0
  %2189 = vmatprep.subr.bf16.mxu0 0
  %2190 = vmatpush1.bf16.msra.mxu0 0
  %2191 = vmatprep.mubr.bf16.mxu0 0
  %2192 = vmatmul.mubr.bf16.gmra.mrb[0].mxu0 %v2080
  %v2193 = vpop.f32.mrb[0].mxu0
  %v2194 = vadd.f32 %v2110, %v2193
  %v2195 = vpop.f32.mrb[0].mxu0
  %v2196 = vpop.f32.mrb[0].mxu0
  %v2197 = vadd.f32 %v2110, %v2196
  %v2198 = vpop.f32.mrb[0].mxu0
  %2199 = vmatprep.mubr.bf16.mxu0 0
  %2200 = vmatmul.mubr.bf16.gmra.mrb[0].mxu0 %v2084
  %v2201 = vpop.f32.mrb[0].mxu0
  %v2202 = vadd.f32 %v2110, %v2201
  %v2203 = vpop.f32.mrb[0].mxu0
  %v2204 = vpop.f32.mrb[0].mxu0
  %v2205 = vadd.f32 %v2110, %v2204
  %v2206 = vpop.f32.mrb[0].mxu0
  %2207 = vmatprep.mubr.bf16.mxu0 0
  %2208 = vmatmul.mubr.bf16.gmra.mrb[0].mxu0 %v2088
  %v2209 = vpop.f32.mrb[0].mxu0
  %v2210 = vadd.f32 %v2110, %v2209
  %v2211 = vpop.f32.mrb[0].mxu0
  %v2212 = vpop.f32.mrb[0].mxu0
  %v2213 = vadd.f32 %v2110, %v2212
  %v2214 = vpop.f32.mrb[0].mxu0
  %2215 = vdwg.mxu0
  %v2216 = vtanh.pop %v2194
  %v2217 = vtanh.pop %v2197
  %v2218 = vtanh.pop %v2202
  %v2219 = vtanh.pop %v2205
  %v2220 = vtanh.pop %v2210
  %v2221 = vtanh.pop %v2213
  %v2222 = vxor.u32 %v2194, 2147483648
  %v2223 = vxor.u32 %v2197, 2147483648
  %v2224 = vxor.u32 %v2202, 2147483648
  %v2225 = vxor.u32 %v2205, 2147483648
  %v2226 = vxor.u32 %v2210, 2147483648
  %v2227 = vxor.u32 %v2213, 2147483648
  %v2228 = vmul.f32 %v2222, 1.442695
  %v2229 = vpow.pop %v2228
  %v2230 = vmul.f32 %v2223, 1.442695
  %v2231 = vpow.pop %v2230
  %v2232 = vmul.f32 %v2224, 1.442695
  %v2233 = vpow.pop %v2232
  %v2234 = vmul.f32 %v2225, 1.442695
  %v2235 = vpow.pop %v2234
  %v2236 = vmul.f32 %v2226, 1.442695
  %v2237 = vpow.pop %v2236
  %v2238 = vmul.f32 %v2227, 1.442695
  %v2239 = vpow.pop %v2238
  %v2240 = vadd.f32 %v2229, 1.0
  %v2241 = vadd.f32 %v2231, 1.0
  %v2242 = vadd.f32 %v2233, 1.0
  %v2243 = vadd.f32 %v2235, 1.0
  %v2244 = vadd.f32 %v2237, 1.0
  %v2245 = vadd.f32 %v2239, 1.0
  %v2246 = vrcp.pop %v2240
  %v2247 = vmul.f32 1.0, %v2246
  %v2248 = vrcp.pop %v2241
  %v2249 = vmul.f32 1.0, %v2248
  %v2250 = vrcp.pop %v2242
  %v2251 = vmul.f32 1.0, %v2250
  %v2252 = vrcp.pop %v2243
  %v2253 = vmul.f32 1.0, %v2252
  %v2254 = vrcp.pop %v2244
  %v2255 = vmul.f32 1.0, %v2254
  %v2256 = vrcp.pop %v2245
  %v2257 = vmul.f32 1.0, %v2256
  %v2258 = vmul.f32 %v2216, %v2247
  %v2259 = vmul.f32 %v2217, %v2249
  %v2260 = vmul.f32 %v2218, %v2251
  %v2261 = vmul.f32 %v2219, %v2253
  %v2262 = vmul.f32 %v2220, %v2255
  %v2263 = vmul.f32 %v2221, %v2257
  %v2264 = vpack.c.bf16 %v2259, %v2258
  %v2265 = vpack.c.bf16 %v2261, %v2260
  %v2266 = vpack.c.bf16 %v2263, %v2262
  %v2267 = vld [vmem:[%s1 + $0x248] sm:$0xf]
  %v2268 = vld [vmem:[%s1 + $0x24c] sm:$0xf]
  %v2269 = vld [vmem:[%s1 + $0x250] sm:$0xf]
  %v2270 = vld [vmem:[%s1 + $0x254] sm:$0xf]
  %v2271 = vld [vmem:[%s1 + $0x258] sm:$0xf]
  %v2272 = vld [vmem:[%s1 + $0x25c] sm:$0xf]
  %v2273 = vld [vmem:[%s1 + $0x260] sm:$0xf]
  %v2274 = vld [vmem:[%s1 + $0x264] sm:$0xf]
  %v2275 = vld [vmem:[%s2 + $0xd] sm:$0x1]
  %v2276 = vlaneseq
  %v2277 = vshrl.u32 %v2276, 7
  %v2278 = vsub.s32 0, %v2277
  %v2279 = vrot.slane %v2275, %v2278
  %v2288 = vunpack.c.l.b16 %v2267
  %v2289 = vunpack.c.l.b16 %v2268
  %v2290 = vunpack.c.l.b16 %v2269
  %v2291 = vunpack.c.l.b16 %v2270
  %v2292 = vunpack.c.l.b16 %v2271
  %v2293 = vunpack.c.l.b16 %v2272
  %v2294 = vunpack.c.l.b16 %v2273
  %v2295 = vunpack.c.l.b16 %v2274
  %v2296 = vpack.c.b16 %v2289, %v2288
  %v2297 = vpack.c.b16 %v2291, %v2290
  %v2298 = vpack.c.b16 %v2293, %v2292
  %v2299 = vpack.c.b16 %v2295, %v2294
  %v2305 = vsel %vm314, %v2264, 0
  %v2308 = vsel %vm314, %v2265, 0
  %v2311 = vsel %vm314, %v2266, 0
  %2313 = vmatprep.subr.bf16.mxu0 0
  %2314 = vmatpush1.bf16.msra.mxu0 %v2296
  %2315 = vmatprep.subr.bf16.mxu0 0
  %2316 = vmatpush1.bf16.msra.mxu0 %v2297
  %2317 = vmatprep.subr.bf16.mxu0 0
  %2318 = vmatpush1.bf16.msra.mxu0 %v2298
  %2319 = vmatprep.subr.bf16.mxu0 0
  %2320 = vmatpush1.bf16.msra.mxu0 %v2299
  %2321 = vmatprep.subr.bf16.mxu0 0
  %2322 = vmatpush1.bf16.msra.mxu0 0
  %2323 = vmatprep.subr.bf16.mxu0 0
  %2324 = vmatpush1.bf16.msra.mxu0 0
  %2325 = vmatprep.subr.bf16.mxu0 0
  %2326 = vmatpush1.bf16.msra.mxu0 0
  %2327 = vmatprep.subr.bf16.mxu0 0
  %2328 = vmatpush1.bf16.msra.mxu0 0
  %2329 = vmatprep.subr.bf16.mxu0 0
  %2330 = vmatpush1.bf16.msra.mxu0 0
  %2331 = vmatprep.subr.bf16.mxu0 0
  %2332 = vmatpush1.bf16.msra.mxu0 0
  %2333 = vmatprep.subr.bf16.mxu0 0
  %2334 = vmatpush1.bf16.msra.mxu0 0
  %2335 = vmatprep.subr.bf16.mxu0 0
  %2336 = vmatpush1.bf16.msra.mxu0 0
  %2337 = vmatprep.subr.bf16.mxu0 0
  %2338 = vmatpush1.bf16.msra.mxu0 0
  %2339 = vmatprep.subr.bf16.mxu0 0
  %2340 = vmatpush1.bf16.msra.mxu0 0
  %2341 = vmatprep.subr.bf16.mxu0 0
  %2342 = vmatpush1.bf16.msra.mxu0 0
  %2343 = vmatprep.subr.bf16.mxu0 0
  %2344 = vmatpush1.bf16.msra.mxu0 0
  %2345 = vmatprep.mubr.bf16.mxu0 0
  %2346 = vmatmul.mubr.bf16.gmra.mrb[0].mxu0 %v2305
  %v2347 = vpop.f32.mrb[0].mxu0
  %v2348 = vadd.f32 %v2279, %v2347
  %v2349 = vpop.f32.mrb[0].mxu0
  %v2350 = vpop.f32.mrb[0].mxu0
  %v2351 = vadd.f32 %v2279, %v2350
  %v2352 = vpop.f32.mrb[0].mxu0
  %2353 = vmatprep.mubr.bf16.mxu0 0
  %2354 = vmatmul.mubr.bf16.gmra.mrb[0].mxu0 %v2308
  %v2355 = vpop.f32.mrb[0].mxu0
  %v2356 = vadd.f32 %v2279, %v2355
  %v2357 = vpop.f32.mrb[0].mxu0
  %v2358 = vpop.f32.mrb[0].mxu0
  %v2359 = vadd.f32 %v2279, %v2358
  %v2360 = vpop.f32.mrb[0].mxu0
  %2361 = vmatprep.mubr.bf16.mxu0 0
  %2362 = vmatmul.mubr.bf16.gmra.mrb[0].mxu0 %v2311
  %v2363 = vpop.f32.mrb[0].mxu0
  %v2364 = vadd.f32 %v2279, %v2363
  %v2365 = vpop.f32.mrb[0].mxu0
  %v2366 = vpop.f32.mrb[0].mxu0
  %v2367 = vadd.f32 %v2279, %v2366
  %v2368 = vpop.f32.mrb[0].mxu0
  %2369 = vdwg.mxu0
  %v2370 = vadd.f32 %v2053, %v2348
  %v2371 = vadd.f32 %v2054, %v2351
  %v2372 = vadd.f32 %v2055, %v2356
  %v2373 = vadd.f32 %v2056, %v2359
  %v2374 = vadd.f32 %v2057, %v2364
  %v2375 = vadd.f32 %v2058, %v2367
  %v2376 = vmax.f32 %v2370, 0.0
  %v2377 = vmax.f32 %v2371, 0.0
  %v2378 = vmax.f32 %v2372, 0.0
  %v2379 = vmax.f32 %v2373, 0.0
  %v2380 = vmax.f32 %v2374, 0.0
  %v2381 = vmax.f32 %v2375, 0.0
  %v2382 = vpack.c.bf16 %v2377, %v2376
  %v2383 = vpack.c.bf16 %v2379, %v2378
  %v2384 = vpack.c.bf16 %v2381, %v2380
  %v2385 = vld [vmem:[%s1 + $0x268] sm:$0xf]
  %v2386 = vld [vmem:[%s1 + $0x26c] sm:$0xf]
  %v2387 = vld [vmem:[%s1 + $0x270] sm:$0xf]
  %v2388 = vld [vmem:[%s1 + $0x274] sm:$0xf]
  %v2389 = vld [vmem:[%s2 + $0xe] sm:$0x1]
  %v2390 = vlaneseq
  %v2391 = vshrl.u32 %v2390, 7
  %v2392 = vsub.s32 0, %v2391
  %v2393 = vrot.slane %v2389, %v2392
  %2397 = vrot.lane.b32.xlu0 %v2382, 64
  %v2398 = vpop.permute.xlu0 %2397
  %2399 = vrot.lane.b32.xlu0 %v2383, 64
  %v2400 = vpop.permute.xlu0 %2399
  %2401 = vrot.lane.b32.xlu0 %v2384, 64
  %v2402 = vpop.permute.xlu0 %2401
  %v2407 = vunpack.c.l.b16 %v2385
  %v2408 = vunpack.c.l.b16 %v2386
  %v2409 = vunpack.c.l.b16 %v2387
  %v2410 = vunpack.c.l.b16 %v2388
  %v2411 = vpack.c.b16 %v2408, %v2407
  %v2412 = vpack.c.b16 %v2410, %v2409
  %v2416 = vsel %vm267, %v2398, 0
  %v2419 = vsel %vm267, %v2400, 0
  %v2422 = vsel %vm267, %v2402, 0
  %2424 = vmatprep.subr.bf16.mxu0 0
  %2425 = vmatpush1.bf16.msra.mxu0 %v2411
  %2426 = vmatprep.subr.bf16.mxu0 0
  %2427 = vmatpush1.bf16.msra.mxu0 %v2412
  %2428 = vmatprep.subr.bf16.mxu0 0
  %2429 = vmatpush1.bf16.msra.mxu0 0
  %2430 = vmatprep.subr.bf16.mxu0 0
  %2431 = vmatpush1.bf16.msra.mxu0 0
  %2432 = vmatprep.subr.bf16.mxu0 0
  %2433 = vmatpush1.bf16.msra.mxu0 0
  %2434 = vmatprep.subr.bf16.mxu0 0
  %2435 = vmatpush1.bf16.msra.mxu0 0
  %2436 = vmatprep.subr.bf16.mxu0 0
  %2437 = vmatpush1.bf16.msra.mxu0 0
  %2438 = vmatprep.subr.bf16.mxu0 0
  %2439 = vmatpush1.bf16.msra.mxu0 0
  %2440 = vmatprep.subr.bf16.mxu0 0
  %2441 = vmatpush1.bf16.msra.mxu0 0
  %2442 = vmatprep.subr.bf16.mxu0 0
  %2443 = vmatpush1.bf16.msra.mxu0 0
  %2444 = vmatprep.subr.bf16.mxu0 0
  %2445 = vmatpush1.bf16.msra.mxu0 0
  %2446 = vmatprep.subr.bf16.mxu0 0
  %2447 = vmatpush1.bf16.msra.mxu0 0
  %2448 = vmatprep.subr.bf16.mxu0 0
  %2449 = vmatpush1.bf16.msra.mxu0 0
  %2450 = vmatprep.subr.bf16.mxu0 0
  %2451 = vmatpush1.bf16.msra.mxu0 0
  %2452 = vmatprep.subr.bf16.mxu0 0
  %2453 = vmatpush1.bf16.msra.mxu0 0
  %2454 = vmatprep.subr.bf16.mxu0 0
  %2455 = vmatpush1.bf16.msra.mxu0 0
  %2456 = vmatprep.mubr.bf16.mxu0 0
  %2457 = vmatmul.mubr.bf16.gmra.mrb[0].mxu0 %v2416
  %v2458 = vpop.f32.mrb[0].mxu0
  %v2459 = vadd.f32 %v2393, %v2458
  %v2460 = vpop.f32.mrb[0].mxu0
  %v2461 = vpop.f32.mrb[0].mxu0
  %v2462 = vadd.f32 %v2393, %v2461
  %v2463 = vpop.f32.mrb[0].mxu0
  %2464 = vmatprep.mubr.bf16.mxu0 0
  %2465 = vmatmul.mubr.bf16.gmra.mrb[0].mxu0 %v2419
  %v2466 = vpop.f32.mrb[0].mxu0
  %v2467 = vadd.f32 %v2393, %v2466
  %v2468 = vpop.f32.mrb[0].mxu0
  %v2469 = vpop.f32.mrb[0].mxu0
  %v2470 = vadd.f32 %v2393, %v2469
  %v2471 = vpop.f32.mrb[0].mxu0
  %2472 = vmatprep.mubr.bf16.mxu0 0
  %2473 = vmatmul.mubr.bf16.gmra.mrb[0].mxu0 %v2422
  %v2474 = vpop.f32.mrb[0].mxu0
  %v2475 = vadd.f32 %v2393, %v2474
  %v2476 = vpop.f32.mrb[0].mxu0
  %v2477 = vpop.f32.mrb[0].mxu0
  %v2478 = vadd.f32 %v2393, %v2477
  %v2479 = vpop.f32.mrb[0].mxu0
  %2480 = vdwg.mxu0
  %v2481 = vmax.f32 %v2459, 0.0
  %v2482 = vmax.f32 %v2462, 0.0
  %v2483 = vmax.f32 %v2467, 0.0
  %v2484 = vmax.f32 %v2470, 0.0
  %v2485 = vmax.f32 %v2475, 0.0
  %v2486 = vmax.f32 %v2478, 0.0
  %v2487 = vpack.c.bf16 %v2482, %v2481
  %v2488 = vpack.c.bf16 %v2484, %v2483
  %v2489 = vpack.c.bf16 %v2486, %v2485
  %v2490 = vld [vmem:[%s1 + $0x278] sm:$0xf]
  %v2491 = vld [vmem:[%s1 + $0x27c] sm:$0xf]
  %v2492 = vld [vmem:[%s2 + $0xf] sm:$0x1]
  %v2493 = vlaneseq
  %v2494 = vshrl.u32 %v2493, 7
  %v2495 = vsub.s32 0, %v2494
  %v2496 = vrot.slane %v2492, %v2495
  %v2499 = vunpack.c.l.b16 %v2490
  %v2500 = vunpack.c.l.b16 %v2491
  %v2501 = vpack.c.b16 %v2500, %v2499
  %vm2503 = vcmask 130048
  %v2505 = vsel %vm2503, %v2487, 0
  %v2508 = vsel %vm2503, %v2488, 0
  %v2511 = vsel %vm2503, %v2489, 0
  %2513 = vmatprep.subr.bf16.mxu0 0
  %2514 = vmatpush1.bf16.msra.mxu0 %v2501
  %2515 = vmatprep.subr.bf16.mxu0 0
  %2516 = vmatpush1.bf16.msra.mxu0 0
  %2517 = vmatprep.subr.bf16.mxu0 0
  %2518 = vmatpush1.bf16.msra.mxu0 0
  %2519 = vmatprep.subr.bf16.mxu0 0
  %2520 = vmatpush1.bf16.msra.mxu0 0
  %2521 = vmatprep.subr.bf16.mxu0 0
  %2522 = vmatpush1.bf16.msra.mxu0 0
  %2523 = vmatprep.subr.bf16.mxu0 0
  %2524 = vmatpush1.bf16.msra.mxu0 0
  %2525 = vmatprep.subr.bf16.mxu0 0
  %2526 = vmatpush1.bf16.msra.mxu0 0
  %2527 = vmatprep.subr.bf16.mxu0 0
  %2528 = vmatpush1.bf16.msra.mxu0 0
  %2529 = vmatprep.subr.bf16.mxu0 0
  %2530 = vmatpush1.bf16.msra.mxu0 0
  %2531 = vmatprep.subr.bf16.mxu0 0
  %2532 = vmatpush1.bf16.msra.mxu0 0
  %2533 = vmatprep.subr.bf16.mxu0 0
  %2534 = vmatpush1.bf16.msra.mxu0 0
  %2535 = vmatprep.subr.bf16.mxu0 0
  %2536 = vmatpush1.bf16.msra.mxu0 0
  %2537 = vmatprep.subr.bf16.mxu0 0
  %2538 = vmatpush1.bf16.msra.mxu0 0
  %2539 = vmatprep.subr.bf16.mxu0 0
  %2540 = vmatpush1.bf16.msra.mxu0 0
  %2541 = vmatprep.subr.bf16.mxu0 0
  %2542 = vmatpush1.bf16.msra.mxu0 0
  %2543 = vmatprep.subr.bf16.mxu0 0
  %2544 = vmatpush1.bf16.msra.mxu0 0
  %2545 = vmatprep.mubr.bf16.mxu0 0
  %2546 = vmatmul.mubr.bf16.gmra.mrb[0].mxu0 %v2505
  %v2547 = vpop.f32.mrb[0].mxu0
  %v2548 = vadd.f32 %v2496, %v2547
  %v2549 = vpop.f32.mrb[0].mxu0
  %v2550 = vpop.f32.mrb[0].mxu0
  %v2551 = vadd.f32 %v2496, %v2550
  %v2552 = vpop.f32.mrb[0].mxu0
  %2553 = vmatprep.mubr.bf16.mxu0 0
  %2554 = vmatmul.mubr.bf16.gmra.mrb[0].mxu0 %v2508
  %v2555 = vpop.f32.mrb[0].mxu0
  %v2556 = vadd.f32 %v2496, %v2555
  %v2557 = vpop.f32.mrb[0].mxu0
  %v2558 = vpop.f32.mrb[0].mxu0
  %v2559 = vadd.f32 %v2496, %v2558
  %v2560 = vpop.f32.mrb[0].mxu0
  %2561 = vmatprep.mubr.bf16.mxu0 0
  %2562 = vmatmul.mubr.bf16.gmra.mrb[0].mxu0 %v2511
  %v2563 = vpop.f32.mrb[0].mxu0
  %v2564 = vadd.f32 %v2496, %v2563
  %v2565 = vpop.f32.mrb[0].mxu0
  %v2566 = vpop.f32.mrb[0].mxu0
  %v2567 = vadd.f32 %v2496, %v2566
  %v2568 = vpop.f32.mrb[0].mxu0
  %2569 = vdwg.mxu0
  %vm2570 = vcmask 7168
  %2571 = vst.msk [vmem:[%s3] sm:$0xff] %vm2570, %v2548
  %2572 = vst.msk [vmem:[%s3 + $0x8] sm:$0xff] %vm2570, %v2551
  %2573 = vst.msk [vmem:[%s3 + $0x10] sm:$0xff] %vm2570, %v2556
  %2574 = vst.msk [vmem:[%s3 + $0x18] sm:$0xff] %vm2570, %v2559
  %2575 = vst.msk [vmem:[%s3 + $0x20] sm:$0xff] %vm2570, %v2564
  %2576 = vst.msk [vmem:[%s3 + $0x28] sm:$0xff] %vm2570, %v2567
  // Predicated region
  $region14: #{glunet_pallas.1} parent=0 // pred_check
    _
  $region15: #{glunet_pallas.1} parent=0 // pred_check_branch
    %2578 = sbr.rel (0) target = $region17
  $region16: #{glunet_pallas.1} parent=0 // pred_region
    _
  $region17: #{glunet_pallas.1} parent=0 // pred_fallthru
    _
  // Predicated region
  $region18: #{glunet_pallas.1} parent=0 // pred_check
    _
  $region19: #{glunet_pallas.1} parent=0 // pred_check_branch
    %2580 = sbr.rel (0) target = $region21
  $region20: #{glunet_pallas.1} parent=0 // pred_region
    _
  $region21: #{glunet_pallas.1} parent=0 // pred_fallthru
    _

</llo_original>
